<compile_context>
chip_gen: v6e
topology: v6e:2x2x1
jax: 0.10.0
libtpu: 0.0.40
codegen_flags: <defaults>
</compile_context>

<pallas_src>
import jax
import jax.numpy as jnp
from jax.experimental import pallas as pl
from jax.experimental.pallas import tpu as pltpu

NB_FEATS = 5 ** 3          # 125
BN_EPS = 1e-5
NUM_LAYERS = 6
POOL_FACTOR = 2 ** NUM_LAYERS   # total length reduction = 64

# (in_channels, out_channels) for the 6 conv layers of AEEncoder3Mer
LAYER_CHANNELS = [
    (NB_FEATS, 128),
    (128, 64),
    (64, 32),
    (32, 32),
    (32, 32),
    (32, 16),
]


def _round_up(n, m):
    return (n + m - 1) // m * m


# ---------------------------------------------------------------------------
# Fused Pallas kernel: the whole encoder for one batch element
# ---------------------------------------------------------------------------
def _encoder_kernel(*refs):
    # refs = (x_ref, w0, s0, b0, ..., w5, s5, b5, out_ref)
    #   x_ref : (1, C0, L)         f32 input (channels zero-padded to C0)
    #   wi    : (Ci_out, 3*Ci_in)  bf16 conv taps [k=0 | k=1 | k=2] on contraction axis
    #   si,bi : (Ci_out, 1)        f32 folded BatchNorm scale / bias
    #   out   : (1, C_last, L // 64)
    x_ref = refs[0]
    out_ref = refs[-1]
    prm = refs[1:-1]
    n_layers = len(prm) // 3

    L = x_ref.shape[2]
    x = x_ref[0].astype(jnp.float32)                  # (C0, L), lanes = length

    stride = 1
    for i in range(n_layers):
        w_ref, scale_ref, bias_ref = prm[3 * i], prm[3 * i + 1], prm[3 * i + 2]
        c = x.shape[0]
        zpad = jnp.zeros((c, stride), jnp.float32)

        # Shifted copies of the current (strided) sequence; the zero columns are
        # exactly the conv's zero padding at both sequence ends.
        x_prev = jnp.concatenate([zpad, x[:, : L - stride]], axis=1)   # x[l-1]
        x_next = jnp.concatenate([x[:, stride:], zpad], axis=1)        # x[l+1]

        # One MXU matmul per layer: (C_out, 3*C_in) @ (3*C_in, L), bf16 in, f32 acc.
        x_cat = jnp.concatenate([x_prev, x, x_next], axis=0).astype(jnp.bfloat16)
        y = jnp.dot(w_ref[...], x_cat, preferred_element_type=jnp.float32)

        # Folded BatchNorm (eval mode) + ReLU in f32.
        y = y * scale_ref[...] + bias_ref[...]
        y = jnp.maximum(y, 0.0)

        # max_pool1d(2) in place: the pool partner sits `stride` lanes to the right.
        y_shift = jnp.concatenate(
            [y[:, stride:], jnp.zeros((y.shape[0], stride), jnp.float32)], axis=1)
        x = jnp.maximum(y, y_shift)
        stride *= 2

    # Valid outputs now sit at lanes 0, stride, 2*stride, ...  (stride == 2**n_layers).
    n_out = L // stride
    cols = [x[:, k * stride: k * stride + 1] for k in range(n_out)]
    out = cols[0] if n_out == 1 else jnp.concatenate(cols, axis=1)
    out_ref[0] = out.astype(out_ref.dtype)


def encoder_pallas(x, folded_params):
    """x: (B, C0_pad, L) f32 with L % 64 == 0  ->  (B, 16, L // 64) f32."""
    B, c0, L = x.shape
    assert L % POOL_FACTOR == 0, "sequence length must be divisible by 2**6"

    in_specs = [pl.BlockSpec((1, c0, L), lambda b: (b, 0, 0))]
    args = [x]
    for (w, scale, bias) in folded_params:
        # Constant index maps: Pallas does not re-fetch unchanged blocks, so the
        # weights are DMA'd once and stay VMEM-resident across the batch grid.
        in_specs.append(pl.BlockSpec(w.shape, lambda b: (0, 0)))
        in_specs.append(pl.BlockSpec(scale.shape, lambda b: (0, 0)))
        in_specs.append(pl.BlockSpec(bias.shape, lambda b: (0, 0)))
        args.extend([w, scale, bias])

    c_last = folded_params[-1][0].shape[0]
    l_out = L // POOL_FACTOR

    return pl.pallas_call(
        _encoder_kernel,
        out_shape=jax.ShapeDtypeStruct((B, c_last, l_out), jnp.float32),
        grid_spec=pltpu.PrefetchScalarGridSpec(
            num_scalar_prefetch=0,
            grid=(B,),
            in_specs=in_specs,
            out_specs=pl.BlockSpec((1, c_last, l_out), lambda b: (b, 0, 0)),
        ),
        compiler_params=pltpu.CompilerParams(
            dimension_semantics=("parallel",)),   # batch axis -> megacore / v7x 2 TCs
    )(*args)


@jax.jit
def encoder_forward(x, folded_params):
    c_in_pad = folded_params[0][0].shape[1] // 3
    B, C, L = x.shape
    if C < c_in_pad:                       # pad 125 -> 128 channels with zeros
        x = jnp.pad(x, ((0, 0), (0, c_in_pad - C), (0, 0)))
    return encoder_pallas(x, folded_params)


# ---------------------------------------------------------------------------
# Parameter construction (deterministic, synthetic) + BN folding / repacking
# ---------------------------------------------------------------------------
def init_params(key):
    params = []
    for (c_in, c_out) in LAYER_CHANNELS:
        key, kw, kb, kg, kbe, km, kv = jax.random.split(key, 7)
        w = jax.random.normal(kw, (c_out, c_in, 3), jnp.float32) * 0.05   # Conv1d weight (OIW)
        b = jax.random.normal(kb, (c_out,), jnp.float32) * 0.05           # Conv1d bias
        gamma = 1.0 + 0.1 * jax.random.normal(kg, (c_out,), jnp.float32)  # BN weight
        beta = 0.1 * jax.random.normal(kbe, (c_out,), jnp.float32)        # BN bias
        mean = 0.1 * jax.random.normal(km, (c_out,), jnp.float32)         # BN running_mean
        var = 0.5 + jax.random.uniform(kv, (c_out,), jnp.float32)         # BN running_var
        params.append(dict(w=w, b=b, gamma=gamma, beta=beta, mean=mean, var=var))
    return params


def fold_layer_params(p):
    """Fold conv bias + eval BatchNorm into per-channel scale/bias; repack the conv
    weight as one (C_out, 3*C_in_pad) bf16 matmul matrix (taps stacked on the
    contraction axis, C_in zero-padded to a multiple of 8 for aligned stacking)."""
    inv_std = 1.0 / jnp.sqrt(p["var"] + BN_EPS)
    scale = p["gamma"] * inv_std                                # (C_out,)
    bias = (p["b"] - p["mean"]) * scale + p["beta"]             # (C_out,)
    w = p["w"]                                                  # (C_out, C_in, 3)
    c_in = w.shape[1]
    c_in_pad = _round_up(c_in, 8)
    if c_in_pad != c_in:
        w = jnp.pad(w, ((0, 0), (0, c_in_pad - c_in), (0, 0)))
    w_cat = jnp.concatenate([w[:, :, 0], w[:, :, 1], w[:, :, 2]], axis=1)
    return (w_cat.astype(jnp.bfloat16),
            scale[:, None].astype(jnp.float32),
            bias[:, None].astype(jnp.float32))


# ---------------------------------------------------------------------------
# Pure-JAX reference (same mixed precision: bf16 conv inputs, f32 accumulation)
# ---------------------------------------------------------------------------
def ref_forward(x, params):
    for p in params:
        y = jax.lax.conv_general_dilated(
            x.astype(jnp.bfloat16), p["w"].astype(jnp.bfloat16),
            window_strides=(1,), padding=((1, 1),),
            dimension_numbers=("NCH", "OIH", "NCH"),
            preferred_element_type=jnp.float32)
        y = y + p["b"][None, :, None]
        y = (y - p["mean"][None, :, None]) / jnp.sqrt(p["var"][None, :, None] + BN_EPS)
        y = y * p["gamma"][None, :, None] + p["beta"][None, :, None]
        y = jnp.maximum(y, 0.0)
        B, C, Lc = y.shape
        x = y.reshape(B, C, Lc // 2, 2).max(axis=-1)
    return x


# ---------------------------------------------------------------------------
if __name__ == "__main__":
    key = jax.random.PRNGKey(0)
    k_params, k_x = jax.random.split(key)

    params = init_params(k_params)
    folded = tuple(fold_layer_params(p) for p in params)

    # Input: (batch=2, NB_FEATS=125 channels, length=64) -> output (2, 16, 1)
    B, L = 2, 64
    x = jax.random.normal(k_x, (B, NB_FEATS, L), jnp.float32)

    out = jax.block_until_ready(encoder_forward(x, folded))
    assert out.shape == (B, 16, L // POOL_FACTOR), out.shape

    ref = jax.block_until_ready(ref_forward(x, params))
    max_err = float(jnp.max(jnp.abs(out - ref)))
    # Both kernel and reference use bf16 matmul inputs with f32 accumulation; small
    # residual differences come from accumulation order / bf16 re-rounding between
    # layers.  Real bugs (tap order, BN fold, pooling) would give O(0.1-1) errors.
    assert jnp.allclose(out, ref, atol=1e-2, rtol=1e-2), max_err

    print("KERNEL_OK")
</pallas_src>

<mosaic_0001>
module attributes {stable_mosaic.version = 11 : i64} {
  func.func @_encoder_kernel(%arg0: i32, %arg1: memref<1x128x64xf32, #tpu.memory_space<vmem>>, %arg2: memref<128x384xbf16, #tpu.memory_space<vmem>>, %arg3: memref<128x1xf32, #tpu.memory_space<vmem>>, %arg4: memref<128x1xf32, #tpu.memory_space<vmem>>, %arg5: memref<64x384xbf16, #tpu.memory_space<vmem>>, %arg6: memref<64x1xf32, #tpu.memory_space<vmem>>, %arg7: memref<64x1xf32, #tpu.memory_space<vmem>>, %arg8: memref<32x192xbf16, #tpu.memory_space<vmem>>, %arg9: memref<32x1xf32, #tpu.memory_space<vmem>>, %arg10: memref<32x1xf32, #tpu.memory_space<vmem>>, %arg11: memref<32x96xbf16, #tpu.memory_space<vmem>>, %arg12: memref<32x1xf32, #tpu.memory_space<vmem>>, %arg13: memref<32x1xf32, #tpu.memory_space<vmem>>, %arg14: memref<32x96xbf16, #tpu.memory_space<vmem>>, %arg15: memref<32x1xf32, #tpu.memory_space<vmem>>, %arg16: memref<32x1xf32, #tpu.memory_space<vmem>>, %arg17: memref<16x96xbf16, #tpu.memory_space<vmem>>, %arg18: memref<16x1xf32, #tpu.memory_space<vmem>>, %arg19: memref<16x1xf32, #tpu.memory_space<vmem>>, %arg20: memref<1x16x1xf32, #tpu.memory_space<vmem>>) attributes {dimension_semantics = [#tpu.dimension_semantics<parallel>], iteration_bounds = array<i64: 2>, scalar_prefetch = 0 : i64, scratch_operands = 0 : i64, tpu.core_type = #tpu.core_type<tc>, window_params = [{transform_indices = @transform_0, window_bounds = array<i64: 1, 128, 64>}, {pipeline_mode = #tpu.pipeline_mode<synchronous>, transform_indices = @transform_1, window_bounds = array<i64: 128, 384>}, {pipeline_mode = #tpu.pipeline_mode<synchronous>, transform_indices = @transform_2, window_bounds = array<i64: 128, 1>}, {pipeline_mode = #tpu.pipeline_mode<synchronous>, transform_indices = @transform_3, window_bounds = array<i64: 128, 1>}, {pipeline_mode = #tpu.pipeline_mode<synchronous>, transform_indices = @transform_4, window_bounds = array<i64: 64, 384>}, {pipeline_mode = #tpu.pipeline_mode<synchronous>, transform_indices = @transform_5, window_bounds = array<i64: 64, 1>}, {pipeline_mode = #tpu.pipeline_mode<synchronous>, transform_indices = @transform_6, window_bounds = array<i64: 64, 1>}, {pipeline_mode = #tpu.pipeline_mode<synchronous>, transform_indices = @transform_7, window_bounds = array<i64: 32, 192>}, {pipeline_mode = #tpu.pipeline_mode<synchronous>, transform_indices = @transform_8, window_bounds = array<i64: 32, 1>}, {pipeline_mode = #tpu.pipeline_mode<synchronous>, transform_indices = @transform_9, window_bounds = array<i64: 32, 1>}, {pipeline_mode = #tpu.pipeline_mode<synchronous>, transform_indices = @transform_10, window_bounds = array<i64: 32, 96>}, {pipeline_mode = #tpu.pipeline_mode<synchronous>, transform_indices = @transform_11, window_bounds = array<i64: 32, 1>}, {pipeline_mode = #tpu.pipeline_mode<synchronous>, transform_indices = @transform_12, window_bounds = array<i64: 32, 1>}, {pipeline_mode = #tpu.pipeline_mode<synchronous>, transform_indices = @transform_13, window_bounds = array<i64: 32, 96>}, {pipeline_mode = #tpu.pipeline_mode<synchronous>, transform_indices = @transform_14, window_bounds = array<i64: 32, 1>}, {pipeline_mode = #tpu.pipeline_mode<synchronous>, transform_indices = @transform_15, window_bounds = array<i64: 32, 1>}, {pipeline_mode = #tpu.pipeline_mode<synchronous>, transform_indices = @transform_16, window_bounds = array<i64: 16, 96>}, {pipeline_mode = #tpu.pipeline_mode<synchronous>, transform_indices = @transform_17, window_bounds = array<i64: 16, 1>}, {pipeline_mode = #tpu.pipeline_mode<synchronous>, transform_indices = @transform_18, window_bounds = array<i64: 16, 1>}, {transform_indices = @transform_19, window_bounds = array<i64: 1, 16, 1>}]} {
    %c0 = arith.constant 0 : index
    %c0_0 = arith.constant 0 : index
    %c0_1 = arith.constant 0 : index
    %0 = vector.load %arg1[%c0, %c0_0, %c0_1] : memref<1x128x64xf32, #tpu.memory_space<vmem>>, vector<1x128x64xf32>
    %1 = vector.shape_cast %0 : vector<1x128x64xf32> to vector<128x64xf32>
    %cst = arith.constant 0.000000e+00 : f32
    %2 = vector.broadcast %cst : f32 to vector<128x1xf32>
    %3 = vector.extract_strided_slice %1 {offsets = [0, 0], sizes = [128, 63], strides = [1, 1]} : vector<128x64xf32> to vector<128x63xf32>
    %4 = tpu.concatenate %2, %3 in 1 : vector<128x1xf32>, vector<128x63xf32> -> vector<128x64xf32>
    %5 = vector.extract_strided_slice %1 {offsets = [0, 1], sizes = [128, 63], strides = [1, 1]} : vector<128x64xf32> to vector<128x63xf32>
    %6 = tpu.concatenate %5, %2 in 1 : vector<128x63xf32>, vector<128x1xf32> -> vector<128x64xf32>
    %7 = tpu.concatenate %4, %1, %6 in 0 : vector<128x64xf32>, vector<128x64xf32>, vector<128x64xf32> -> vector<384x64xf32>
    %8 = arith.truncf %7 : vector<384x64xf32> to vector<384x64xbf16>
    %c0_2 = arith.constant 0 : index
    %c0_3 = arith.constant 0 : index
    %9 = vector.load %arg2[%c0_2, %c0_3] : memref<128x384xbf16, #tpu.memory_space<vmem>>, vector<128x384xbf16>
    %cst_4 = arith.constant dense<0.000000e+00> : vector<128x64xf32>
    %10 = tpu.matmul %9, %8, %cst_4 {dimension_numbers = #tpu.dot_dimension_numbers<[1], [0], [0], [1], [0, 0, 1, 1], [], []>} : vector<128x384xbf16>, vector<384x64xbf16>, vector<128x64xf32> -> vector<128x64xf32>
    %c0_5 = arith.constant 0 : index
    %c0_6 = arith.constant 0 : index
    %11 = vector.load %arg3[%c0_5, %c0_6] : memref<128x1xf32, #tpu.memory_space<vmem>>, vector<128x1xf32>
    %12 = vector.broadcast %11 : vector<128x1xf32> to vector<128x64xf32>
    %13 = arith.mulf %10, %12 : vector<128x64xf32>
    %c0_7 = arith.constant 0 : index
    %c0_8 = arith.constant 0 : index
    %14 = vector.load %arg4[%c0_7, %c0_8] : memref<128x1xf32, #tpu.memory_space<vmem>>, vector<128x1xf32>
    %15 = vector.broadcast %14 : vector<128x1xf32> to vector<128x64xf32>
    %16 = arith.addf %13, %15 : vector<128x64xf32>
    %cst_9 = arith.constant 0.000000e+00 : f32
    %17 = vector.broadcast %cst_9 : f32 to vector<128x64xf32>
    %18 = arith.maximumf %16, %17 : vector<128x64xf32>
    %19 = vector.extract_strided_slice %18 {offsets = [0, 1], sizes = [128, 63], strides = [1, 1]} : vector<128x64xf32> to vector<128x63xf32>
    %cst_10 = arith.constant 0.000000e+00 : f32
    %20 = vector.broadcast %cst_10 : f32 to vector<128x1xf32>
    %21 = tpu.concatenate %19, %20 in 1 : vector<128x63xf32>, vector<128x1xf32> -> vector<128x64xf32>
    %22 = arith.maximumf %18, %21 : vector<128x64xf32>
    %cst_11 = arith.constant 0.000000e+00 : f32
    %23 = vector.broadcast %cst_11 : f32 to vector<128x2xf32>
    %24 = vector.extract_strided_slice %22 {offsets = [0, 0], sizes = [128, 62], strides = [1, 1]} : vector<128x64xf32> to vector<128x62xf32>
    %25 = tpu.concatenate %23, %24 in 1 : vector<128x2xf32>, vector<128x62xf32> -> vector<128x64xf32>
    %26 = vector.extract_strided_slice %22 {offsets = [0, 2], sizes = [128, 62], strides = [1, 1]} : vector<128x64xf32> to vector<128x62xf32>
    %27 = tpu.concatenate %26, %23 in 1 : vector<128x62xf32>, vector<128x2xf32> -> vector<128x64xf32>
    %28 = tpu.concatenate %25, %22, %27 in 0 : vector<128x64xf32>, vector<128x64xf32>, vector<128x64xf32> -> vector<384x64xf32>
    %29 = arith.truncf %28 : vector<384x64xf32> to vector<384x64xbf16>
    %c0_12 = arith.constant 0 : index
    %c0_13 = arith.constant 0 : index
    %30 = vector.load %arg5[%c0_12, %c0_13] : memref<64x384xbf16, #tpu.memory_space<vmem>>, vector<64x384xbf16>
    %cst_14 = arith.constant dense<0.000000e+00> : vector<64x64xf32>
    %31 = tpu.matmul %30, %29, %cst_14 {dimension_numbers = #tpu.dot_dimension_numbers<[1], [0], [0], [1], [0, 0, 1, 1], [], []>} : vector<64x384xbf16>, vector<384x64xbf16>, vector<64x64xf32> -> vector<64x64xf32>
    %c0_15 = arith.constant 0 : index
    %c0_16 = arith.constant 0 : index
    %32 = vector.load %arg6[%c0_15, %c0_16] : memref<64x1xf32, #tpu.memory_space<vmem>>, vector<64x1xf32>
    %33 = vector.broadcast %32 : vector<64x1xf32> to vector<64x64xf32>
    %34 = arith.mulf %31, %33 : vector<64x64xf32>
    %c0_17 = arith.constant 0 : index
    %c0_18 = arith.constant 0 : index
    %35 = vector.load %arg7[%c0_17, %c0_18] : memref<64x1xf32, #tpu.memory_space<vmem>>, vector<64x1xf32>
    %36 = vector.broadcast %35 : vector<64x1xf32> to vector<64x64xf32>
    %37 = arith.addf %34, %36 : vector<64x64xf32>
    %cst_19 = arith.constant 0.000000e+00 : f32
    %38 = vector.broadcast %cst_19 : f32 to vector<64x64xf32>
    %39 = arith.maximumf %37, %38 : vector<64x64xf32>
    %40 = vector.extract_strided_slice %39 {offsets = [0, 2], sizes = [64, 62], strides = [1, 1]} : vector<64x64xf32> to vector<64x62xf32>
    %cst_20 = arith.constant 0.000000e+00 : f32
    %41 = vector.broadcast %cst_20 : f32 to vector<64x2xf32>
    %42 = tpu.concatenate %40, %41 in 1 : vector<64x62xf32>, vector<64x2xf32> -> vector<64x64xf32>
    %43 = arith.maximumf %39, %42 : vector<64x64xf32>
    %cst_21 = arith.constant 0.000000e+00 : f32
    %44 = vector.broadcast %cst_21 : f32 to vector<64x4xf32>
    %45 = vector.extract_strided_slice %43 {offsets = [0, 0], sizes = [64, 60], strides = [1, 1]} : vector<64x64xf32> to vector<64x60xf32>
    %46 = tpu.concatenate %44, %45 in 1 : vector<64x4xf32>, vector<64x60xf32> -> vector<64x64xf32>
    %47 = vector.extract_strided_slice %43 {offsets = [0, 4], sizes = [64, 60], strides = [1, 1]} : vector<64x64xf32> to vector<64x60xf32>
    %48 = tpu.concatenate %47, %44 in 1 : vector<64x60xf32>, vector<64x4xf32> -> vector<64x64xf32>
    %49 = tpu.concatenate %46, %43, %48 in 0 : vector<64x64xf32>, vector<64x64xf32>, vector<64x64xf32> -> vector<192x64xf32>
    %50 = arith.truncf %49 : vector<192x64xf32> to vector<192x64xbf16>
    %c0_22 = arith.constant 0 : index
    %c0_23 = arith.constant 0 : index
    %51 = vector.load %arg8[%c0_22, %c0_23] : memref<32x192xbf16, #tpu.memory_space<vmem>>, vector<32x192xbf16>
    %cst_24 = arith.constant dense<0.000000e+00> : vector<32x64xf32>
    %52 = tpu.matmul %51, %50, %cst_24 {dimension_numbers = #tpu.dot_dimension_numbers<[1], [0], [0], [1], [0, 0, 1, 1], [], []>} : vector<32x192xbf16>, vector<192x64xbf16>, vector<32x64xf32> -> vector<32x64xf32>
    %c0_25 = arith.constant 0 : index
    %c0_26 = arith.constant 0 : index
    %53 = vector.load %arg9[%c0_25, %c0_26] : memref<32x1xf32, #tpu.memory_space<vmem>>, vector<32x1xf32>
    %54 = vector.broadcast %53 : vector<32x1xf32> to vector<32x64xf32>
    %55 = arith.mulf %52, %54 : vector<32x64xf32>
    %c0_27 = arith.constant 0 : index
    %c0_28 = arith.constant 0 : index
    %56 = vector.load %arg10[%c0_27, %c0_28] : memref<32x1xf32, #tpu.memory_space<vmem>>, vector<32x1xf32>
    %57 = vector.broadcast %56 : vector<32x1xf32> to vector<32x64xf32>
    %58 = arith.addf %55, %57 : vector<32x64xf32>
    %cst_29 = arith.constant 0.000000e+00 : f32
    %59 = vector.broadcast %cst_29 : f32 to vector<32x64xf32>
    %60 = arith.maximumf %58, %59 : vector<32x64xf32>
    %61 = vector.extract_strided_slice %60 {offsets = [0, 4], sizes = [32, 60], strides = [1, 1]} : vector<32x64xf32> to vector<32x60xf32>
    %cst_30 = arith.constant 0.000000e+00 : f32
    %62 = vector.broadcast %cst_30 : f32 to vector<32x4xf32>
    %63 = tpu.concatenate %61, %62 in 1 : vector<32x60xf32>, vector<32x4xf32> -> vector<32x64xf32>
    %64 = arith.maximumf %60, %63 : vector<32x64xf32>
    %cst_31 = arith.constant 0.000000e+00 : f32
    %65 = vector.broadcast %cst_31 : f32 to vector<32x8xf32>
    %66 = vector.extract_strided_slice %64 {offsets = [0, 0], sizes = [32, 56], strides = [1, 1]} : vector<32x64xf32> to vector<32x56xf32>
    %67 = tpu.concatenate %65, %66 in 1 : vector<32x8xf32>, vector<32x56xf32> -> vector<32x64xf32>
    %68 = vector.extract_strided_slice %64 {offsets = [0, 8], sizes = [32, 56], strides = [1, 1]} : vector<32x64xf32> to vector<32x56xf32>
    %69 = tpu.concatenate %68, %65 in 1 : vector<32x56xf32>, vector<32x8xf32> -> vector<32x64xf32>
    %70 = tpu.concatenate %67, %64, %69 in 0 : vector<32x64xf32>, vector<32x64xf32>, vector<32x64xf32> -> vector<96x64xf32>
    %71 = arith.truncf %70 : vector<96x64xf32> to vector<96x64xbf16>
    %c0_32 = arith.constant 0 : index
    %c0_33 = arith.constant 0 : index
    %72 = vector.load %arg11[%c0_32, %c0_33] : memref<32x96xbf16, #tpu.memory_space<vmem>>, vector<32x96xbf16>
    %cst_34 = arith.constant dense<0.000000e+00> : vector<32x64xf32>
    %73 = tpu.matmul %72, %71, %cst_34 {dimension_numbers = #tpu.dot_dimension_numbers<[1], [0], [0], [1], [0, 0, 1, 1], [], []>} : vector<32x96xbf16>, vector<96x64xbf16>, vector<32x64xf32> -> vector<32x64xf32>
    %c0_35 = arith.constant 0 : index
    %c0_36 = arith.constant 0 : index
    %74 = vector.load %arg12[%c0_35, %c0_36] : memref<32x1xf32, #tpu.memory_space<vmem>>, vector<32x1xf32>
    %75 = vector.broadcast %74 : vector<32x1xf32> to vector<32x64xf32>
    %76 = arith.mulf %73, %75 : vector<32x64xf32>
    %c0_37 = arith.constant 0 : index
    %c0_38 = arith.constant 0 : index
    %77 = vector.load %arg13[%c0_37, %c0_38] : memref<32x1xf32, #tpu.memory_space<vmem>>, vector<32x1xf32>
    %78 = vector.broadcast %77 : vector<32x1xf32> to vector<32x64xf32>
    %79 = arith.addf %76, %78 : vector<32x64xf32>
    %cst_39 = arith.constant 0.000000e+00 : f32
    %80 = vector.broadcast %cst_39 : f32 to vector<32x64xf32>
    %81 = arith.maximumf %79, %80 : vector<32x64xf32>
    %82 = vector.extract_strided_slice %81 {offsets = [0, 8], sizes = [32, 56], strides = [1, 1]} : vector<32x64xf32> to vector<32x56xf32>
    %cst_40 = arith.constant 0.000000e+00 : f32
    %83 = vector.broadcast %cst_40 : f32 to vector<32x8xf32>
    %84 = tpu.concatenate %82, %83 in 1 : vector<32x56xf32>, vector<32x8xf32> -> vector<32x64xf32>
    %85 = arith.maximumf %81, %84 : vector<32x64xf32>
    %cst_41 = arith.constant 0.000000e+00 : f32
    %86 = vector.broadcast %cst_41 : f32 to vector<32x16xf32>
    %87 = vector.extract_strided_slice %85 {offsets = [0, 0], sizes = [32, 48], strides = [1, 1]} : vector<32x64xf32> to vector<32x48xf32>
    %88 = tpu.concatenate %86, %87 in 1 : vector<32x16xf32>, vector<32x48xf32> -> vector<32x64xf32>
    %89 = vector.extract_strided_slice %85 {offsets = [0, 16], sizes = [32, 48], strides = [1, 1]} : vector<32x64xf32> to vector<32x48xf32>
    %90 = tpu.concatenate %89, %86 in 1 : vector<32x48xf32>, vector<32x16xf32> -> vector<32x64xf32>
    %91 = tpu.concatenate %88, %85, %90 in 0 : vector<32x64xf32>, vector<32x64xf32>, vector<32x64xf32> -> vector<96x64xf32>
    %92 = arith.truncf %91 : vector<96x64xf32> to vector<96x64xbf16>
    %c0_42 = arith.constant 0 : index
    %c0_43 = arith.constant 0 : index
    %93 = vector.load %arg14[%c0_42, %c0_43] : memref<32x96xbf16, #tpu.memory_space<vmem>>, vector<32x96xbf16>
    %cst_44 = arith.constant dense<0.000000e+00> : vector<32x64xf32>
    %94 = tpu.matmul %93, %92, %cst_44 {dimension_numbers = #tpu.dot_dimension_numbers<[1], [0], [0], [1], [0, 0, 1, 1], [], []>} : vector<32x96xbf16>, vector<96x64xbf16>, vector<32x64xf32> -> vector<32x64xf32>
    %c0_45 = arith.constant 0 : index
    %c0_46 = arith.constant 0 : index
    %95 = vector.load %arg15[%c0_45, %c0_46] : memref<32x1xf32, #tpu.memory_space<vmem>>, vector<32x1xf32>
    %96 = vector.broadcast %95 : vector<32x1xf32> to vector<32x64xf32>
    %97 = arith.mulf %94, %96 : vector<32x64xf32>
    %c0_47 = arith.constant 0 : index
    %c0_48 = arith.constant 0 : index
    %98 = vector.load %arg16[%c0_47, %c0_48] : memref<32x1xf32, #tpu.memory_space<vmem>>, vector<32x1xf32>
    %99 = vector.broadcast %98 : vector<32x1xf32> to vector<32x64xf32>
    %100 = arith.addf %97, %99 : vector<32x64xf32>
    %cst_49 = arith.constant 0.000000e+00 : f32
    %101 = vector.broadcast %cst_49 : f32 to vector<32x64xf32>
    %102 = arith.maximumf %100, %101 : vector<32x64xf32>
    %103 = vector.extract_strided_slice %102 {offsets = [0, 16], sizes = [32, 48], strides = [1, 1]} : vector<32x64xf32> to vector<32x48xf32>
    %cst_50 = arith.constant 0.000000e+00 : f32
    %104 = vector.broadcast %cst_50 : f32 to vector<32x16xf32>
    %105 = tpu.concatenate %103, %104 in 1 : vector<32x48xf32>, vector<32x16xf32> -> vector<32x64xf32>
    %106 = arith.maximumf %102, %105 : vector<32x64xf32>
    %cst_51 = arith.constant 0.000000e+00 : f32
    %107 = vector.broadcast %cst_51 : f32 to vector<32x32xf32>
    %108 = vector.extract_strided_slice %106 {offsets = [0, 0], sizes = [32, 32], strides = [1, 1]} : vector<32x64xf32> to vector<32x32xf32>
    %109 = tpu.concatenate %107, %108 in 1 : vector<32x32xf32>, vector<32x32xf32> -> vector<32x64xf32>
    %110 = vector.extract_strided_slice %106 {offsets = [0, 32], sizes = [32, 32], strides = [1, 1]} : vector<32x64xf32> to vector<32x32xf32>
    %111 = tpu.concatenate %110, %107 in 1 : vector<32x32xf32>, vector<32x32xf32> -> vector<32x64xf32>
    %112 = tpu.concatenate %109, %106, %111 in 0 : vector<32x64xf32>, vector<32x64xf32>, vector<32x64xf32> -> vector<96x64xf32>
    %113 = arith.truncf %112 : vector<96x64xf32> to vector<96x64xbf16>
    %c0_52 = arith.constant 0 : index
    %c0_53 = arith.constant 0 : index
    %114 = vector.load %arg17[%c0_52, %c0_53] : memref<16x96xbf16, #tpu.memory_space<vmem>>, vector<16x96xbf16>
    %cst_54 = arith.constant dense<0.000000e+00> : vector<16x64xf32>
    %115 = tpu.matmul %114, %113, %cst_54 {dimension_numbers = #tpu.dot_dimension_numbers<[1], [0], [0], [1], [0, 0, 1, 1], [], []>} : vector<16x96xbf16>, vector<96x64xbf16>, vector<16x64xf32> -> vector<16x64xf32>
    %c0_55 = arith.constant 0 : index
    %c0_56 = arith.constant 0 : index
    %116 = vector.load %arg18[%c0_55, %c0_56] : memref<16x1xf32, #tpu.memory_space<vmem>>, vector<16x1xf32>
    %117 = vector.broadcast %116 : vector<16x1xf32> to vector<16x64xf32>
    %118 = arith.mulf %115, %117 : vector<16x64xf32>
    %c0_57 = arith.constant 0 : index
    %c0_58 = arith.constant 0 : index
    %119 = vector.load %arg19[%c0_57, %c0_58] : memref<16x1xf32, #tpu.memory_space<vmem>>, vector<16x1xf32>
    %120 = vector.broadcast %119 : vector<16x1xf32> to vector<16x64xf32>
    %121 = arith.addf %118, %120 : vector<16x64xf32>
    %cst_59 = arith.constant 0.000000e+00 : f32
    %122 = vector.broadcast %cst_59 : f32 to vector<16x64xf32>
    %123 = arith.maximumf %121, %122 : vector<16x64xf32>
    %124 = vector.extract_strided_slice %123 {offsets = [0, 32], sizes = [16, 32], strides = [1, 1]} : vector<16x64xf32> to vector<16x32xf32>
    %cst_60 = arith.constant 0.000000e+00 : f32
    %125 = vector.broadcast %cst_60 : f32 to vector<16x32xf32>
    %126 = tpu.concatenate %124, %125 in 1 : vector<16x32xf32>, vector<16x32xf32> -> vector<16x64xf32>
    %127 = arith.maximumf %123, %126 : vector<16x64xf32>
    %128 = vector.extract_strided_slice %127 {offsets = [0, 0], sizes = [16, 1], strides = [1, 1]} : vector<16x64xf32> to vector<16x1xf32>
    %c0_61 = arith.constant 0 : index
    %c0_62 = arith.constant 0 : index
    %c0_63 = arith.constant 0 : index
    %129 = vector.load %arg20[%c0_61, %c0_62, %c0_63] : memref<1x16x1xf32, #tpu.memory_space<vmem>>, vector<1x16x1xf32>
    %130 = vector.shape_cast %129 : vector<1x16x1xf32> to vector<16x1xf32>
    %131 = vector.shape_cast %128 : vector<16x1xf32> to vector<1x16x1xf32>
    tpu.vector_store %arg20[%c0_61, %c0_62, %c0_63], %131 {strides = array<i32>} : memref<1x16x1xf32, #tpu.memory_space<vmem>>, vector<1x16x1xf32>,
    return
  }
  func.func @transform_0(%arg0: i32) -> (i32, i32, i32) {
    %c0_i32 = arith.constant 0 : i32
    %c0_i32_0 = arith.constant 0 : i32
    %c0_i32_1 = arith.constant 0 : i32
    return %arg0, %c0_i32, %c0_i32_0 : i32, i32, i32
  }
  func.func @transform_1(%arg0: i32) -> (i32, i32) {
    %c0_i32 = arith.constant 0 : i32
    %c0_i32_0 = arith.constant 0 : i32
    %c0_i32_1 = arith.constant 0 : i32
    return %c0_i32, %c0_i32_0 : i32, i32
  }
  func.func @transform_2(%arg0: i32) -> (i32, i32) {
    %c0_i32 = arith.constant 0 : i32
    %c0_i32_0 = arith.constant 0 : i32
    %c0_i32_1 = arith.constant 0 : i32
    return %c0_i32, %c0_i32_0 : i32, i32
  }
  func.func @transform_3(%arg0: i32) -> (i32, i32) {
    %c0_i32 = arith.constant 0 : i32
    %c0_i32_0 = arith.constant 0 : i32
    %c0_i32_1 = arith.constant 0 : i32
    return %c0_i32, %c0_i32_0 : i32, i32
  }
  func.func @transform_4(%arg0: i32) -> (i32, i32) {
    %c0_i32 = arith.constant 0 : i32
    %c0_i32_0 = arith.constant 0 : i32
    %c0_i32_1 = arith.constant 0 : i32
    return %c0_i32, %c0_i32_0 : i32, i32
  }
  func.func @transform_5(%arg0: i32) -> (i32, i32) {
    %c0_i32 = arith.constant 0 : i32
    %c0_i32_0 = arith.constant 0 : i32
    %c0_i32_1 = arith.constant 0 : i32
    return %c0_i32, %c0_i32_0 : i32, i32
  }
  func.func @transform_6(%arg0: i32) -> (i32, i32) {
    %c0_i32 = arith.constant 0 : i32
    %c0_i32_0 = arith.constant 0 : i32
    %c0_i32_1 = arith.constant 0 : i32
    return %c0_i32, %c0_i32_0 : i32, i32
  }
  func.func @transform_7(%arg0: i32) -> (i32, i32) {
    %c0_i32 = arith.constant 0 : i32
    %c0_i32_0 = arith.constant 0 : i32
    %c0_i32_1 = arith.constant 0 : i32
    return %c0_i32, %c0_i32_0 : i32, i32
  }
  func.func @transform_8(%arg0: i32) -> (i32, i32) {
    %c0_i32 = arith.constant 0 : i32
    %c0_i32_0 = arith.constant 0 : i32
    %c0_i32_1 = arith.constant 0 : i32
    return %c0_i32, %c0_i32_0 : i32, i32
  }
  func.func @transform_9(%arg0: i32) -> (i32, i32) {
    %c0_i32 = arith.constant 0 : i32
    %c0_i32_0 = arith.constant 0 : i32
    %c0_i32_1 = arith.constant 0 : i32
    return %c0_i32, %c0_i32_0 : i32, i32
  }
  func.func @transform_10(%arg0: i32) -> (i32, i32) {
    %c0_i32 = arith.constant 0 : i32
    %c0_i32_0 = arith.constant 0 : i32
    %c0_i32_1 = arith.constant 0 : i32
    return %c0_i32, %c0_i32_0 : i32, i32
  }
  func.func @transform_11(%arg0: i32) -> (i32, i32) {
    %c0_i32 = arith.constant 0 : i32
    %c0_i32_0 = arith.constant 0 : i32
    %c0_i32_1 = arith.constant 0 : i32
    return %c0_i32, %c0_i32_0 : i32, i32
  }
  func.func @transform_12(%arg0: i32) -> (i32, i32) {
    %c0_i32 = arith.constant 0 : i32
    %c0_i32_0 = arith.constant 0 : i32
    %c0_i32_1 = arith.constant 0 : i32
    return %c0_i32, %c0_i32_0 : i32, i32
  }
  func.func @transform_13(%arg0: i32) -> (i32, i32) {
    %c0_i32 = arith.constant 0 : i32
    %c0_i32_0 = arith.constant 0 : i32
    %c0_i32_1 = arith.constant 0 : i32
    return %c0_i32, %c0_i32_0 : i32, i32
  }
  func.func @transform_14(%arg0: i32) -> (i32, i32) {
    %c0_i32 = arith.constant 0 : i32
    %c0_i32_0 = arith.constant 0 : i32
    %c0_i32_1 = arith.constant 0 : i32
    return %c0_i32, %c0_i32_0 : i32, i32
  }
  func.func @transform_15(%arg0: i32) -> (i32, i32) {
    %c0_i32 = arith.constant 0 : i32
    %c0_i32_0 = arith.constant 0 : i32
    %c0_i32_1 = arith.constant 0 : i32
    return %c0_i32, %c0_i32_0 : i32, i32
  }
  func.func @transform_16(%arg0: i32) -> (i32, i32) {
    %c0_i32 = arith.constant 0 : i32
    %c0_i32_0 = arith.constant 0 : i32
    %c0_i32_1 = arith.constant 0 : i32
    return %c0_i32, %c0_i32_0 : i32, i32
  }
  func.func @transform_17(%arg0: i32) -> (i32, i32) {
    %c0_i32 = arith.constant 0 : i32
    %c0_i32_0 = arith.constant 0 : i32
    %c0_i32_1 = arith.constant 0 : i32
    return %c0_i32, %c0_i32_0 : i32, i32
  }
  func.func @transform_18(%arg0: i32) -> (i32, i32) {
    %c0_i32 = arith.constant 0 : i32
    %c0_i32_0 = arith.constant 0 : i32
    %c0_i32_1 = arith.constant 0 : i32
    return %c0_i32, %c0_i32_0 : i32, i32
  }
  func.func @transform_19(%arg0: i32) -> (i32, i32, i32) {
    %c0_i32 = arith.constant 0 : i32
    %c0_i32_0 = arith.constant 0 : i32
    %c0_i32_1 = arith.constant 0 : i32
    return %arg0, %c0_i32, %c0_i32_0 : i32, i32, i32
  }
}

</mosaic_0001>

<llo_original>
// kernel: encoder_forward.1
$region0: #{encoder_forward.1}
  #allocation0 [shape = 'u32[]', space=smem, size = 0x4, offset = 0x4, fixed_abs, tag = 'smem constant byte address 0x4 - core index']
  #allocation1 [shape = 'u32[144,128]{1,0:T(1,128)}', space=vmem, size = 0x12000, scoped, tag = 'internal scratch']
  %s0 = inlined_call_operand.vmem [shape: f32[2,128,64], index: 0, kind: input, shape index: {}]
  %s1 = inlined_call_operand.vmem [shape: bf16[128,384], index: 1, kind: input, shape index: {}]
  %s2 = inlined_call_operand.vmem [shape: f32[128,1], index: 2, kind: input, shape index: {}]
  %s3 = inlined_call_operand.vmem [shape: f32[128,1], index: 3, kind: input, shape index: {}]
  %s4 = inlined_call_operand.vmem [shape: bf16[64,384], index: 4, kind: input, shape index: {}]
  %s5 = inlined_call_operand.vmem [shape: f32[64,1], index: 5, kind: input, shape index: {}]
  %s6 = inlined_call_operand.vmem [shape: f32[64,1], index: 6, kind: input, shape index: {}]
  %s7 = inlined_call_operand.vmem [shape: bf16[32,192], index: 7, kind: input, shape index: {}]
  %s8 = inlined_call_operand.vmem [shape: f32[32,1], index: 8, kind: input, shape index: {}]
  %s9 = inlined_call_operand.vmem [shape: f32[32,1], index: 9, kind: input, shape index: {}]
  %s10 = inlined_call_operand.vmem [shape: bf16[32,96], index: 10, kind: input, shape index: {}]
  %s11 = inlined_call_operand.vmem [shape: f32[32,1], index: 11, kind: input, shape index: {}]
  %s12 = inlined_call_operand.vmem [shape: f32[32,1], index: 12, kind: input, shape index: {}]
  %s13 = inlined_call_operand.vmem [shape: bf16[32,96], index: 13, kind: input, shape index: {}]
  %s14 = inlined_call_operand.vmem [shape: f32[32,1], index: 14, kind: input, shape index: {}]
  %s15 = inlined_call_operand.vmem [shape: f32[32,1], index: 15, kind: input, shape index: {}]
  %s16 = inlined_call_operand.vmem [shape: bf16[16,96], index: 16, kind: input, shape index: {}]
  %s17 = inlined_call_operand.vmem [shape: f32[16,1], index: 17, kind: input, shape index: {}]
  %s18 = inlined_call_operand.vmem [shape: f32[16,1], index: 18, kind: input, shape index: {}]
  %s19 = inlined_call_operand.vmem [shape: f32[2,16,1], index: 19, kind: output, shape index: {}]
  %s20 = sld [smem:[#allocation0]]
  $region109: #{encoder_forward.1} parent=0
    _
  %s22 = ssub.s32 1, %s20
  %s23 = scalar_select 0, %s22, %s20
  loop: start=0, step=1, limit=4
  $region2: #{encoder_forward.1} parent=0 // loop_pre_header
    _
  $region3: #{encoder_forward.1} parent=0 // loop_header
    %s25 = sphi 0, %s29
    %p26 = scmp.ge.s32.totalorder %s25, 4
    %s35 = sphi 0, %s37
    %s38 = sphi 0, %s35
    %s39 = sphi 0, %s38
    %s55 = sphi 0, %s39
    %s59 = sphi 0, %s59
    %s61 = sphi 0, %s59
    %s62 = sphi 0, %s61
    %s76 = sphi 0, %s62
    %s80 = sphi 0, %s80
    %s82 = sphi 0, %s80
    %s83 = sphi 0, %s82
    %s97 = sphi 0, %s83
    %s101 = sphi 0, %s101
    %s103 = sphi 0, %s101
    %s104 = sphi 0, %s103
    %s118 = sphi 0, %s104
    %s122 = sphi 0, %s122
    %s124 = sphi 0, %s122
    %s125 = sphi 0, %s124
    %s139 = sphi 0, %s125
    %s143 = sphi 0, %s143
    %s145 = sphi 0, %s143
    %s146 = sphi 0, %s145
    %s160 = sphi 0, %s146
    %s164 = sphi 0, %s164
    %s166 = sphi 0, %s164
    %s167 = sphi 0, %s166
    %s181 = sphi 0, %s167
    %s185 = sphi 0, %s185
    %s187 = sphi 0, %s185
    %s188 = sphi 0, %s187
    %s202 = sphi 0, %s188
    %s206 = sphi 0, %s206
    %s208 = sphi 0, %s206
    %s209 = sphi 0, %s208
    %s223 = sphi 0, %s209
    %s227 = sphi 0, %s227
    %s229 = sphi 0, %s227
    %s230 = sphi 0, %s229
    %s244 = sphi 0, %s230
    %s248 = sphi 0, %s248
    %s250 = sphi 0, %s248
    %s251 = sphi 0, %s250
    %s265 = sphi 0, %s251
    %s269 = sphi 0, %s269
    %s271 = sphi 0, %s269
    %s272 = sphi 0, %s271
    %s286 = sphi 0, %s272
    %s290 = sphi 0, %s290
    %s292 = sphi 0, %s290
    %s293 = sphi 0, %s292
    %s307 = sphi 0, %s293
    %s311 = sphi 0, %s311
    %s313 = sphi 0, %s311
    %s314 = sphi 0, %s313
    %s328 = sphi 0, %s314
    %s332 = sphi 0, %s332
    %s334 = sphi 0, %s332
    %s335 = sphi 0, %s334
    %s349 = sphi 0, %s335
    %s353 = sphi 0, %s353
    %s355 = sphi 0, %s353
    %s356 = sphi 0, %s355
    %s370 = sphi 0, %s356
    %s374 = sphi 0, %s374
    %s376 = sphi 0, %s374
    %s377 = sphi 0, %s376
    %s391 = sphi 0, %s377
    %s395 = sphi 0, %s395
    %s397 = sphi 0, %s395
    %s398 = sphi 0, %s397
    %s412 = sphi 0, %s398
    %s416 = sphi 0, %s416
    %s418 = sphi 0, %s416
    %s419 = sphi 0, %s418
    %s433 = sphi 0, %s419
    %s439 = sphi 0, %s441
    %s442 = sphi 0, %s439
    %s443 = sphi 0, %s442
    %s459 = sphi 0, %s443
  $region4: #{encoder_forward.1} parent=0 // loop_header_branch
    %28 = sbr.rel (%p26) target = $region8
  $region5: #{encoder_forward.1} parent=0 // loop_body
    %s30 = ssub.s32 %s25, 1
    %s31 = ssub.s32 %s25, 2
    %s32 = sadd.s32 %s25, 1
    %s33 = ssub.s32 %s25, %s32
    %p34 = scmp.eq.s32.totalorder %s33, 0
    %s36 = sadd.s32 %s35, 1
    %s37 = scalar_select %p34, %s35, %s36
    %p40 = pneg %p34
    %p41 = scmp.eq.s32.totalorder %s25, 1
    %p42 = por %p40, %p41
    %p43 = scmp.ne.s32.totalorder %s35, %s38
    %p44 = scmp.eq.s32.totalorder %s25, 0
    %p45 = por %p43, %p44
    %p46 = scmp.ne.s32.totalorder %s35, %s38
    %p47 = scmp.eq.s32.totalorder %s30, 1
    %p48 = por %p46, %p47
    %p49 = scmp.ne.s32.totalorder %s38, %s39
    %p50 = scmp.eq.s32.totalorder %s30, 0
    %p51 = por %p49, %p50
    %p52 = scmp.ne.s32.totalorder %s38, %s39
    %p53 = scmp.eq.s32.totalorder %s31, 1
    %p54 = por %p52, %p53
    %p56 = scmp.ne.s32.totalorder %s39, %s55
    %p57 = scmp.eq.s32.totalorder %s31, 0
    %p58 = por %p56, %p57
    %s60 = sadd.s32 %s59, 1
    %p63 = scmp.eq.s32.totalorder %s25, 1
    %p64 = scmp.ne.s32.totalorder %s59, %s61
    %p65 = scmp.eq.s32.totalorder %s25, 0
    %p66 = por %p64, %p65
    %p67 = scmp.ne.s32.totalorder %s59, %s61
    %p68 = scmp.eq.s32.totalorder %s30, 1
    %p69 = por %p67, %p68
    %p70 = scmp.ne.s32.totalorder %s61, %s62
    %p71 = scmp.eq.s32.totalorder %s30, 0
    %p72 = por %p70, %p71
    %p73 = scmp.ne.s32.totalorder %s61, %s62
    %p74 = scmp.eq.s32.totalorder %s31, 1
    %p75 = por %p73, %p74
    %p77 = scmp.ne.s32.totalorder %s62, %s76
    %p78 = scmp.eq.s32.totalorder %s31, 0
    %p79 = por %p77, %p78
    %s81 = sadd.s32 %s80, 1
    %p84 = scmp.eq.s32.totalorder %s25, 1
    %p85 = scmp.ne.s32.totalorder %s80, %s82
    %p86 = scmp.eq.s32.totalorder %s25, 0
    %p87 = por %p85, %p86
    %p88 = scmp.ne.s32.totalorder %s80, %s82
    %p89 = scmp.eq.s32.totalorder %s30, 1
    %p90 = por %p88, %p89
    %p91 = scmp.ne.s32.totalorder %s82, %s83
    %p92 = scmp.eq.s32.totalorder %s30, 0
    %p93 = por %p91, %p92
    %p94 = scmp.ne.s32.totalorder %s82, %s83
    %p95 = scmp.eq.s32.totalorder %s31, 1
    %p96 = por %p94, %p95
    %p98 = scmp.ne.s32.totalorder %s83, %s97
    %p99 = scmp.eq.s32.totalorder %s31, 0
    %p100 = por %p98, %p99
    %s102 = sadd.s32 %s101, 1
    %p105 = scmp.eq.s32.totalorder %s25, 1
    %p106 = scmp.ne.s32.totalorder %s101, %s103
    %p107 = scmp.eq.s32.totalorder %s25, 0
    %p108 = por %p106, %p107
    %p109 = scmp.ne.s32.totalorder %s101, %s103
    %p110 = scmp.eq.s32.totalorder %s30, 1
    %p111 = por %p109, %p110
    %p112 = scmp.ne.s32.totalorder %s103, %s104
    %p113 = scmp.eq.s32.totalorder %s30, 0
    %p114 = por %p112, %p113
    %p115 = scmp.ne.s32.totalorder %s103, %s104
    %p116 = scmp.eq.s32.totalorder %s31, 1
    %p117 = por %p115, %p116
    %p119 = scmp.ne.s32.totalorder %s104, %s118
    %p120 = scmp.eq.s32.totalorder %s31, 0
    %p121 = por %p119, %p120
    %s123 = sadd.s32 %s122, 1
    %p126 = scmp.eq.s32.totalorder %s25, 1
    %p127 = scmp.ne.s32.totalorder %s122, %s124
    %p128 = scmp.eq.s32.totalorder %s25, 0
    %p129 = por %p127, %p128
    %p130 = scmp.ne.s32.totalorder %s122, %s124
    %p131 = scmp.eq.s32.totalorder %s30, 1
    %p132 = por %p130, %p131
    %p133 = scmp.ne.s32.totalorder %s124, %s125
    %p134 = scmp.eq.s32.totalorder %s30, 0
    %p135 = por %p133, %p134
    %p136 = scmp.ne.s32.totalorder %s124, %s125
    %p137 = scmp.eq.s32.totalorder %s31, 1
    %p138 = por %p136, %p137
    %p140 = scmp.ne.s32.totalorder %s125, %s139
    %p141 = scmp.eq.s32.totalorder %s31, 0
    %p142 = por %p140, %p141
    %s144 = sadd.s32 %s143, 1
    %p147 = scmp.eq.s32.totalorder %s25, 1
    %p148 = scmp.ne.s32.totalorder %s143, %s145
    %p149 = scmp.eq.s32.totalorder %s25, 0
    %p150 = por %p148, %p149
    %p151 = scmp.ne.s32.totalorder %s143, %s145
    %p152 = scmp.eq.s32.totalorder %s30, 1
    %p153 = por %p151, %p152
    %p154 = scmp.ne.s32.totalorder %s145, %s146
    %p155 = scmp.eq.s32.totalorder %s30, 0
    %p156 = por %p154, %p155
    %p157 = scmp.ne.s32.totalorder %s145, %s146
    %p158 = scmp.eq.s32.totalorder %s31, 1
    %p159 = por %p157, %p158
    %p161 = scmp.ne.s32.totalorder %s146, %s160
    %p162 = scmp.eq.s32.totalorder %s31, 0
    %p163 = por %p161, %p162
    %s165 = sadd.s32 %s164, 1
    %p168 = scmp.eq.s32.totalorder %s25, 1
    %p169 = scmp.ne.s32.totalorder %s164, %s166
    %p170 = scmp.eq.s32.totalorder %s25, 0
    %p171 = por %p169, %p170
    %p172 = scmp.ne.s32.totalorder %s164, %s166
    %p173 = scmp.eq.s32.totalorder %s30, 1
    %p174 = por %p172, %p173
    %p175 = scmp.ne.s32.totalorder %s166, %s167
    %p176 = scmp.eq.s32.totalorder %s30, 0
    %p177 = por %p175, %p176
    %p178 = scmp.ne.s32.totalorder %s166, %s167
    %p179 = scmp.eq.s32.totalorder %s31, 1
    %p180 = por %p178, %p179
    %p182 = scmp.ne.s32.totalorder %s167, %s181
    %p183 = scmp.eq.s32.totalorder %s31, 0
    %p184 = por %p182, %p183
    %s186 = sadd.s32 %s185, 1
    %p189 = scmp.eq.s32.totalorder %s25, 1
    %p190 = scmp.ne.s32.totalorder %s185, %s187
    %p191 = scmp.eq.s32.totalorder %s25, 0
    %p192 = por %p190, %p191
    %p193 = scmp.ne.s32.totalorder %s185, %s187
    %p194 = scmp.eq.s32.totalorder %s30, 1
    %p195 = por %p193, %p194
    %p196 = scmp.ne.s32.totalorder %s187, %s188
    %p197 = scmp.eq.s32.totalorder %s30, 0
    %p198 = por %p196, %p197
    %p199 = scmp.ne.s32.totalorder %s187, %s188
    %p200 = scmp.eq.s32.totalorder %s31, 1
    %p201 = por %p199, %p200
    %p203 = scmp.ne.s32.totalorder %s188, %s202
    %p204 = scmp.eq.s32.totalorder %s31, 0
    %p205 = por %p203, %p204
    %s207 = sadd.s32 %s206, 1
    %p210 = scmp.eq.s32.totalorder %s25, 1
    %p211 = scmp.ne.s32.totalorder %s206, %s208
    %p212 = scmp.eq.s32.totalorder %s25, 0
    %p213 = por %p211, %p212
    %p214 = scmp.ne.s32.totalorder %s206, %s208
    %p215 = scmp.eq.s32.totalorder %s30, 1
    %p216 = por %p214, %p215
    %p217 = scmp.ne.s32.totalorder %s208, %s209
    %p218 = scmp.eq.s32.totalorder %s30, 0
    %p219 = por %p217, %p218
    %p220 = scmp.ne.s32.totalorder %s208, %s209
    %p221 = scmp.eq.s32.totalorder %s31, 1
    %p222 = por %p220, %p221
    %p224 = scmp.ne.s32.totalorder %s209, %s223
    %p225 = scmp.eq.s32.totalorder %s31, 0
    %p226 = por %p224, %p225
    %s228 = sadd.s32 %s227, 1
    %p231 = scmp.eq.s32.totalorder %s25, 1
    %p232 = scmp.ne.s32.totalorder %s227, %s229
    %p233 = scmp.eq.s32.totalorder %s25, 0
    %p234 = por %p232, %p233
    %p235 = scmp.ne.s32.totalorder %s227, %s229
    %p236 = scmp.eq.s32.totalorder %s30, 1
    %p237 = por %p235, %p236
    %p238 = scmp.ne.s32.totalorder %s229, %s230
    %p239 = scmp.eq.s32.totalorder %s30, 0
    %p240 = por %p238, %p239
    %p241 = scmp.ne.s32.totalorder %s229, %s230
    %p242 = scmp.eq.s32.totalorder %s31, 1
    %p243 = por %p241, %p242
    %p245 = scmp.ne.s32.totalorder %s230, %s244
    %p246 = scmp.eq.s32.totalorder %s31, 0
    %p247 = por %p245, %p246
    %s249 = sadd.s32 %s248, 1
    %p252 = scmp.eq.s32.totalorder %s25, 1
    %p253 = scmp.ne.s32.totalorder %s248, %s250
    %p254 = scmp.eq.s32.totalorder %s25, 0
    %p255 = por %p253, %p254
    %p256 = scmp.ne.s32.totalorder %s248, %s250
    %p257 = scmp.eq.s32.totalorder %s30, 1
    %p258 = por %p256, %p257
    %p259 = scmp.ne.s32.totalorder %s250, %s251
    %p260 = scmp.eq.s32.totalorder %s30, 0
    %p261 = por %p259, %p260
    %p262 = scmp.ne.s32.totalorder %s250, %s251
    %p263 = scmp.eq.s32.totalorder %s31, 1
    %p264 = por %p262, %p263
    %p266 = scmp.ne.s32.totalorder %s251, %s265
    %p267 = scmp.eq.s32.totalorder %s31, 0
    %p268 = por %p266, %p267
    %s270 = sadd.s32 %s269, 1
    %p273 = scmp.eq.s32.totalorder %s25, 1
    %p274 = scmp.ne.s32.totalorder %s269, %s271
    %p275 = scmp.eq.s32.totalorder %s25, 0
    %p276 = por %p274, %p275
    %p277 = scmp.ne.s32.totalorder %s269, %s271
    %p278 = scmp.eq.s32.totalorder %s30, 1
    %p279 = por %p277, %p278
    %p280 = scmp.ne.s32.totalorder %s271, %s272
    %p281 = scmp.eq.s32.totalorder %s30, 0
    %p282 = por %p280, %p281
    %p283 = scmp.ne.s32.totalorder %s271, %s272
    %p284 = scmp.eq.s32.totalorder %s31, 1
    %p285 = por %p283, %p284
    %p287 = scmp.ne.s32.totalorder %s272, %s286
    %p288 = scmp.eq.s32.totalorder %s31, 0
    %p289 = por %p287, %p288
    %s291 = sadd.s32 %s290, 1
    %p294 = scmp.eq.s32.totalorder %s25, 1
    %p295 = scmp.ne.s32.totalorder %s290, %s292
    %p296 = scmp.eq.s32.totalorder %s25, 0
    %p297 = por %p295, %p296
    %p298 = scmp.ne.s32.totalorder %s290, %s292
    %p299 = scmp.eq.s32.totalorder %s30, 1
    %p300 = por %p298, %p299
    %p301 = scmp.ne.s32.totalorder %s292, %s293
    %p302 = scmp.eq.s32.totalorder %s30, 0
    %p303 = por %p301, %p302
    %p304 = scmp.ne.s32.totalorder %s292, %s293
    %p305 = scmp.eq.s32.totalorder %s31, 1
    %p306 = por %p304, %p305
    %p308 = scmp.ne.s32.totalorder %s293, %s307
    %p309 = scmp.eq.s32.totalorder %s31, 0
    %p310 = por %p308, %p309
    %s312 = sadd.s32 %s311, 1
    %p315 = scmp.eq.s32.totalorder %s25, 1
    %p316 = scmp.ne.s32.totalorder %s311, %s313
    %p317 = scmp.eq.s32.totalorder %s25, 0
    %p318 = por %p316, %p317
    %p319 = scmp.ne.s32.totalorder %s311, %s313
    %p320 = scmp.eq.s32.totalorder %s30, 1
    %p321 = por %p319, %p320
    %p322 = scmp.ne.s32.totalorder %s313, %s314
    %p323 = scmp.eq.s32.totalorder %s30, 0
    %p324 = por %p322, %p323
    %p325 = scmp.ne.s32.totalorder %s313, %s314
    %p326 = scmp.eq.s32.totalorder %s31, 1
    %p327 = por %p325, %p326
    %p329 = scmp.ne.s32.totalorder %s314, %s328
    %p330 = scmp.eq.s32.totalorder %s31, 0
    %p331 = por %p329, %p330
    %s333 = sadd.s32 %s332, 1
    %p336 = scmp.eq.s32.totalorder %s25, 1
    %p337 = scmp.ne.s32.totalorder %s332, %s334
    %p338 = scmp.eq.s32.totalorder %s25, 0
    %p339 = por %p337, %p338
    %p340 = scmp.ne.s32.totalorder %s332, %s334
    %p341 = scmp.eq.s32.totalorder %s30, 1
    %p342 = por %p340, %p341
    %p343 = scmp.ne.s32.totalorder %s334, %s335
    %p344 = scmp.eq.s32.totalorder %s30, 0
    %p345 = por %p343, %p344
    %p346 = scmp.ne.s32.totalorder %s334, %s335
    %p347 = scmp.eq.s32.totalorder %s31, 1
    %p348 = por %p346, %p347
    %p350 = scmp.ne.s32.totalorder %s335, %s349
    %p351 = scmp.eq.s32.totalorder %s31, 0
    %p352 = por %p350, %p351
    %s354 = sadd.s32 %s353, 1
    %p357 = scmp.eq.s32.totalorder %s25, 1
    %p358 = scmp.ne.s32.totalorder %s353, %s355
    %p359 = scmp.eq.s32.totalorder %s25, 0
    %p360 = por %p358, %p359
    %p361 = scmp.ne.s32.totalorder %s353, %s355
    %p362 = scmp.eq.s32.totalorder %s30, 1
    %p363 = por %p361, %p362
    %p364 = scmp.ne.s32.totalorder %s355, %s356
    %p365 = scmp.eq.s32.totalorder %s30, 0
    %p366 = por %p364, %p365
    %p367 = scmp.ne.s32.totalorder %s355, %s356
    %p368 = scmp.eq.s32.totalorder %s31, 1
    %p369 = por %p367, %p368
    %p371 = scmp.ne.s32.totalorder %s356, %s370
    %p372 = scmp.eq.s32.totalorder %s31, 0
    %p373 = por %p371, %p372
    %s375 = sadd.s32 %s374, 1
    %p378 = scmp.eq.s32.totalorder %s25, 1
    %p379 = scmp.ne.s32.totalorder %s374, %s376
    %p380 = scmp.eq.s32.totalorder %s25, 0
    %p381 = por %p379, %p380
    %p382 = scmp.ne.s32.totalorder %s374, %s376
    %p383 = scmp.eq.s32.totalorder %s30, 1
    %p384 = por %p382, %p383
    %p385 = scmp.ne.s32.totalorder %s376, %s377
    %p386 = scmp.eq.s32.totalorder %s30, 0
    %p387 = por %p385, %p386
    %p388 = scmp.ne.s32.totalorder %s376, %s377
    %p389 = scmp.eq.s32.totalorder %s31, 1
    %p390 = por %p388, %p389
    %p392 = scmp.ne.s32.totalorder %s377, %s391
    %p393 = scmp.eq.s32.totalorder %s31, 0
    %p394 = por %p392, %p393
    %s396 = sadd.s32 %s395, 1
    %p399 = scmp.eq.s32.totalorder %s25, 1
    %p400 = scmp.ne.s32.totalorder %s395, %s397
    %p401 = scmp.eq.s32.totalorder %s25, 0
    %p402 = por %p400, %p401
    %p403 = scmp.ne.s32.totalorder %s395, %s397
    %p404 = scmp.eq.s32.totalorder %s30, 1
    %p405 = por %p403, %p404
    %p406 = scmp.ne.s32.totalorder %s397, %s398
    %p407 = scmp.eq.s32.totalorder %s30, 0
    %p408 = por %p406, %p407
    %p409 = scmp.ne.s32.totalorder %s397, %s398
    %p410 = scmp.eq.s32.totalorder %s31, 1
    %p411 = por %p409, %p410
    %p413 = scmp.ne.s32.totalorder %s398, %s412
    %p414 = scmp.eq.s32.totalorder %s31, 0
    %p415 = por %p413, %p414
    %s417 = sadd.s32 %s416, 1
    %p420 = scmp.eq.s32.totalorder %s25, 1
    %p421 = scmp.ne.s32.totalorder %s416, %s418
    %p422 = scmp.eq.s32.totalorder %s25, 0
    %p423 = por %p421, %p422
    %p424 = scmp.ne.s32.totalorder %s416, %s418
    %p425 = scmp.eq.s32.totalorder %s30, 1
    %p426 = por %p424, %p425
    %p427 = scmp.ne.s32.totalorder %s418, %s419
    %p428 = scmp.eq.s32.totalorder %s30, 0
    %p429 = por %p427, %p428
    %p430 = scmp.ne.s32.totalorder %s418, %s419
    %p431 = scmp.eq.s32.totalorder %s31, 1
    %p432 = por %p430, %p431
    %p434 = scmp.ne.s32.totalorder %s419, %s433
    %p435 = scmp.eq.s32.totalorder %s31, 0
    %p436 = por %p434, %p435
    %s437 = ssub.s32 %s25, %s32
    %p438 = scmp.eq.s32.totalorder %s437, 0
    %s440 = sadd.s32 %s439, 1
    %s441 = scalar_select %p438, %s439, %s440
    %p444 = pneg %p438
    %p445 = scmp.eq.s32.totalorder %s25, 1
    %p446 = por %p444, %p445
    %p447 = scmp.ne.s32.totalorder %s439, %s442
    %p448 = scmp.eq.s32.totalorder %s25, 0
    %p449 = por %p447, %p448
    %p450 = scmp.ne.s32.totalorder %s439, %s442
    %p451 = scmp.eq.s32.totalorder %s30, 1
    %p452 = por %p450, %p451
    %p453 = scmp.ne.s32.totalorder %s442, %s443
    %p454 = scmp.eq.s32.totalorder %s30, 0
    %p455 = por %p453, %p454
    %p456 = scmp.ne.s32.totalorder %s442, %s443
    %p457 = scmp.eq.s32.totalorder %s31, 1
    %p458 = por %p456, %p457
    %p460 = scmp.ne.s32.totalorder %s443, %s459
    %p461 = scmp.eq.s32.totalorder %s31, 0
    %p462 = por %p460, %p461
    %p463 = scmp.le.s32.totalorder 1, %s25
    %p464 = scmp.lt.s32.totalorder %s25, 3
    %p465 = pnand %p463, %p464
    %p466 = pneg %p465
    // Predicated region
    $region9: #{encoder_forward.1} parent=5 // pred_check
      _
    $region10: #{encoder_forward.1} parent=5 // pred_check_branch
      %468 = sbr.rel (%p465) target = $region12
    $region11: #{encoder_forward.1} parent=5 // pred_region
      %s469 = ssub.s32 %s25, 1
      // Predicated region
      $region13: #{encoder_forward.1} parent=11 // pred_check
        %p470 = pneg %p72
      $region14: #{encoder_forward.1} parent=11 // pred_check_branch
        %472 = sbr.rel (%p470) target = $region16
      $region15: #{encoder_forward.1} parent=11 // pred_region
        _
      $region16: #{encoder_forward.1} parent=11 // pred_fallthru
        _
      // Predicated region
      $region17: #{encoder_forward.1} parent=11 // pred_check
        %p473 = pneg %p93
      $region18: #{encoder_forward.1} parent=11 // pred_check_branch
        %475 = sbr.rel (%p473) target = $region20
      $region19: #{encoder_forward.1} parent=11 // pred_region
        _
      $region20: #{encoder_forward.1} parent=11 // pred_fallthru
        _
      // Predicated region
      $region21: #{encoder_forward.1} parent=11 // pred_check
        %p476 = pneg %p114
      $region22: #{encoder_forward.1} parent=11 // pred_check_branch
        %478 = sbr.rel (%p476) target = $region24
      $region23: #{encoder_forward.1} parent=11 // pred_region
        _
      $region24: #{encoder_forward.1} parent=11 // pred_fallthru
        _
      // Predicated region
      $region25: #{encoder_forward.1} parent=11 // pred_check
        %p479 = pneg %p135
      $region26: #{encoder_forward.1} parent=11 // pred_check_branch
        %481 = sbr.rel (%p479) target = $region28
      $region27: #{encoder_forward.1} parent=11 // pred_region
        _
      $region28: #{encoder_forward.1} parent=11 // pred_fallthru
        _
      // Predicated region
      $region29: #{encoder_forward.1} parent=11 // pred_check
        %p482 = pneg %p156
      $region30: #{encoder_forward.1} parent=11 // pred_check_branch
        %484 = sbr.rel (%p482) target = $region32
      $region31: #{encoder_forward.1} parent=11 // pred_region
        _
      $region32: #{encoder_forward.1} parent=11 // pred_fallthru
        _
      // Predicated region
      $region33: #{encoder_forward.1} parent=11 // pred_check
        %p485 = pneg %p177
      $region34: #{encoder_forward.1} parent=11 // pred_check_branch
        %487 = sbr.rel (%p485) target = $region36
      $region35: #{encoder_forward.1} parent=11 // pred_region
        _
      $region36: #{encoder_forward.1} parent=11 // pred_fallthru
        _
      // Predicated region
      $region37: #{encoder_forward.1} parent=11 // pred_check
        %p488 = pneg %p198
      $region38: #{encoder_forward.1} parent=11 // pred_check_branch
        %490 = sbr.rel (%p488) target = $region40
      $region39: #{encoder_forward.1} parent=11 // pred_region
        _
      $region40: #{encoder_forward.1} parent=11 // pred_fallthru
        _
      // Predicated region
      $region41: #{encoder_forward.1} parent=11 // pred_check
        %p491 = pneg %p219
      $region42: #{encoder_forward.1} parent=11 // pred_check_branch
        %493 = sbr.rel (%p491) target = $region44
      $region43: #{encoder_forward.1} parent=11 // pred_region
        _
      $region44: #{encoder_forward.1} parent=11 // pred_fallthru
        _
      // Predicated region
      $region45: #{encoder_forward.1} parent=11 // pred_check
        %p494 = pneg %p240
      $region46: #{encoder_forward.1} parent=11 // pred_check_branch
        %496 = sbr.rel (%p494) target = $region48
      $region47: #{encoder_forward.1} parent=11 // pred_region
        _
      $region48: #{encoder_forward.1} parent=11 // pred_fallthru
        _
      // Predicated region
      $region49: #{encoder_forward.1} parent=11 // pred_check
        %p497 = pneg %p261
      $region50: #{encoder_forward.1} parent=11 // pred_check_branch
        %499 = sbr.rel (%p497) target = $region52
      $region51: #{encoder_forward.1} parent=11 // pred_region
        _
      $region52: #{encoder_forward.1} parent=11 // pred_fallthru
        _
      // Predicated region
      $region53: #{encoder_forward.1} parent=11 // pred_check
        %p500 = pneg %p282
      $region54: #{encoder_forward.1} parent=11 // pred_check_branch
        %502 = sbr.rel (%p500) target = $region56
      $region55: #{encoder_forward.1} parent=11 // pred_region
        _
      $region56: #{encoder_forward.1} parent=11 // pred_fallthru
        _
      // Predicated region
      $region57: #{encoder_forward.1} parent=11 // pred_check
        %p503 = pneg %p303
      $region58: #{encoder_forward.1} parent=11 // pred_check_branch
        %505 = sbr.rel (%p503) target = $region60
      $region59: #{encoder_forward.1} parent=11 // pred_region
        _
      $region60: #{encoder_forward.1} parent=11 // pred_fallthru
        _
      // Predicated region
      $region61: #{encoder_forward.1} parent=11 // pred_check
        %p506 = pneg %p324
      $region62: #{encoder_forward.1} parent=11 // pred_check_branch
        %508 = sbr.rel (%p506) target = $region64
      $region63: #{encoder_forward.1} parent=11 // pred_region
        _
      $region64: #{encoder_forward.1} parent=11 // pred_fallthru
        _
      // Predicated region
      $region65: #{encoder_forward.1} parent=11 // pred_check
        %p509 = pneg %p345
      $region66: #{encoder_forward.1} parent=11 // pred_check_branch
        %511 = sbr.rel (%p509) target = $region68
      $region67: #{encoder_forward.1} parent=11 // pred_region
        _
      $region68: #{encoder_forward.1} parent=11 // pred_fallthru
        _
      // Predicated region
      $region69: #{encoder_forward.1} parent=11 // pred_check
        %p512 = pneg %p366
      $region70: #{encoder_forward.1} parent=11 // pred_check_branch
        %514 = sbr.rel (%p512) target = $region72
      $region71: #{encoder_forward.1} parent=11 // pred_region
        _
      $region72: #{encoder_forward.1} parent=11 // pred_fallthru
        _
      // Predicated region
      $region73: #{encoder_forward.1} parent=11 // pred_check
        %p515 = pneg %p387
      $region74: #{encoder_forward.1} parent=11 // pred_check_branch
        %517 = sbr.rel (%p515) target = $region76
      $region75: #{encoder_forward.1} parent=11 // pred_region
        _
      $region76: #{encoder_forward.1} parent=11 // pred_fallthru
        _
      // Predicated region
      $region77: #{encoder_forward.1} parent=11 // pred_check
        %p518 = pneg %p408
      $region78: #{encoder_forward.1} parent=11 // pred_check_branch
        %520 = sbr.rel (%p518) target = $region80
      $region79: #{encoder_forward.1} parent=11 // pred_region
        _
      $region80: #{encoder_forward.1} parent=11 // pred_fallthru
        _
      // Predicated region
      $region81: #{encoder_forward.1} parent=11 // pred_check
        %p521 = pneg %p429
      $region82: #{encoder_forward.1} parent=11 // pred_check_branch
        %523 = sbr.rel (%p521) target = $region84
      $region83: #{encoder_forward.1} parent=11 // pred_region
        _
      $region84: #{encoder_forward.1} parent=11 // pred_fallthru
        _
    $region12: #{encoder_forward.1} parent=5 // pred_fallthru
      _
    %p524 = scmp.lt.s32.totalorder %s25, 2
    // Predicated region
    $region85: #{encoder_forward.1} parent=5 // pred_check
      %p525 = pneg %p524
    $region86: #{encoder_forward.1} parent=5 // pred_check_branch
      %527 = sbr.rel (%p525) target = $region88
    $region87: #{encoder_forward.1} parent=5 // pred_region
      // Predicated region
      $region89: #{encoder_forward.1} parent=87 // pred_check
        %p528 = pneg %p45
      $region90: #{encoder_forward.1} parent=87 // pred_check_branch
        %530 = sbr.rel (%p528) target = $region92
      $region91: #{encoder_forward.1} parent=87 // pred_region
        %p531 = scmp.lt.s32.totalorder %s25, 1
        %s532 = scalar_select %p531, %s25, 1
        %s533 = smul.addr %s532, 16
        %s534 = smul.addr %s533, 8
        %s535 = scalar_lea.vmem %s0, %s534
      $region92: #{encoder_forward.1} parent=87 // pred_fallthru
        _
    $region88: #{encoder_forward.1} parent=5 // pred_fallthru
      _
    %p536 = scmp.le.s32.totalorder 1, %s25
    %p537 = scmp.lt.s32.totalorder %s25, 3
    %p538 = pnand %p536, %p537
    %p539 = pneg %p538
    // Predicated region
    $region93: #{encoder_forward.1} parent=5 // pred_check
      _
    $region94: #{encoder_forward.1} parent=5 // pred_check_branch
      %541 = sbr.rel (%p538) target = $region96
    $region95: #{encoder_forward.1} parent=5 // pred_region
      %s542 = ssub.s32 %s25, 1
      %p543 = scmp.lt.s32.totalorder %s30, 1
      %s544 = scalar_select %p543, %s30, 1
      %s545 = smul.addr %s544, 16
      %s546 = smul.addr %s545, 8
      %s547 = scalar_lea.vmem %s0, %s546
      %p548 = pneg %p51
      %p549 = pneg %p48
      %p550 = pneg %p72
      %p551 = pneg %p69
      %p552 = pneg %p93
      %p553 = pneg %p90
      %p554 = pneg %p114
      %p555 = pneg %p111
      %p556 = pneg %p135
      %p557 = pneg %p132
      %p558 = pneg %p156
      %p559 = pneg %p153
      %p560 = pneg %p177
      %p561 = pneg %p174
      %p562 = pneg %p198
      %p563 = pneg %p195
      %p564 = pneg %p219
      %p565 = pneg %p216
      %p566 = pneg %p240
      %p567 = pneg %p237
      %p568 = pneg %p261
      %p569 = pneg %p258
      %p570 = pneg %p282
      %p571 = pneg %p279
      %p572 = pneg %p303
      %p573 = pneg %p300
      %p574 = pneg %p324
      %p575 = pneg %p321
      %p576 = pneg %p345
      %p577 = pneg %p342
      %p578 = pneg %p366
      %p579 = pneg %p363
      %p580 = pneg %p387
      %p581 = pneg %p384
      %p582 = pneg %p408
      %p583 = pneg %p405
      %p584 = pneg %p429
      %p585 = pneg %p426
      %p586 = pneg %p455
      %p587 = pneg %p452
      %p588 = scmp.lt.s32.totalorder %s30, 1
      %s589 = scalar_select %p588, %s30, 1
      %s590 = smul.addr %s589, 2
      %s591 = smul.addr %s590, 8
      %s592 = scalar_lea.vmem %s19, %s591
      %p593 = scmp.lt.s32.totalorder %s30, 1
      %s594 = scalar_select %p593, %s30, 1
      %s595 = smul.addr %s594, 16
      %s596 = smul.addr %s595, 8
      %s597 = scalar_lea.vmem %s0, %s596
      %p598 = scmp.lt.s32.totalorder %s30, 1
      %s599 = scalar_select %p598, %s30, 1
      %s600 = smul.addr %s599, 2
      %s601 = smul.addr %s600, 8
      %s602 = scalar_lea.vmem %s19, %s601
      %v604 = vld [vmem:[%s597] sm:$0xff]
      %v605 = vld [vmem:[%s597 + $0x8] sm:$0xff]
      %v606 = vld [vmem:[%s597 + $0x10] sm:$0xff]
      %v607 = vld [vmem:[%s597 + $0x18] sm:$0xff]
      %v608 = vld [vmem:[%s597 + $0x20] sm:$0xff]
      %v609 = vld [vmem:[%s597 + $0x28] sm:$0xff]
      %v610 = vld [vmem:[%s597 + $0x30] sm:$0xff]
      %v611 = vld [vmem:[%s597 + $0x38] sm:$0xff]
      %v612 = vld [vmem:[%s597 + $0x40] sm:$0xff]
      %v613 = vld [vmem:[%s597 + $0x48] sm:$0xff]
      %v614 = vld [vmem:[%s597 + $0x50] sm:$0xff]
      %v615 = vld [vmem:[%s597 + $0x58] sm:$0xff]
      %v616 = vld [vmem:[%s597 + $0x60] sm:$0xff]
      %v617 = vld [vmem:[%s597 + $0x68] sm:$0xff]
      %v618 = vld [vmem:[%s597 + $0x70] sm:$0xff]
      %v619 = vld [vmem:[%s597 + $0x78] sm:$0xff]
      %636 = vrot.lane.b32.xlu0 %v604, 1
      %v637 = vpop.permute.xlu0 %636
      %638 = vrot.lane.b32.xlu0 %v605, 1
      %v639 = vpop.permute.xlu0 %638
      %640 = vrot.lane.b32.xlu0 %v606, 1
      %v641 = vpop.permute.xlu0 %640
      %642 = vrot.lane.b32.xlu0 %v607, 1
      %v643 = vpop.permute.xlu0 %642
      %644 = vrot.lane.b32.xlu0 %v608, 1
      %v645 = vpop.permute.xlu0 %644
      %646 = vrot.lane.b32.xlu0 %v609, 1
      %v647 = vpop.permute.xlu0 %646
      %648 = vrot.lane.b32.xlu0 %v610, 1
      %v649 = vpop.permute.xlu0 %648
      %650 = vrot.lane.b32.xlu0 %v611, 1
      %v651 = vpop.permute.xlu0 %650
      %652 = vrot.lane.b32.xlu0 %v612, 1
      %v653 = vpop.permute.xlu0 %652
      %654 = vrot.lane.b32.xlu0 %v613, 1
      %v655 = vpop.permute.xlu0 %654
      %656 = vrot.lane.b32.xlu0 %v614, 1
      %v657 = vpop.permute.xlu0 %656
      %658 = vrot.lane.b32.xlu0 %v615, 1
      %v659 = vpop.permute.xlu0 %658
      %660 = vrot.lane.b32.xlu0 %v616, 1
      %v661 = vpop.permute.xlu0 %660
      %662 = vrot.lane.b32.xlu0 %v617, 1
      %v663 = vpop.permute.xlu0 %662
      %664 = vrot.lane.b32.xlu0 %v618, 1
      %v665 = vpop.permute.xlu0 %664
      %666 = vrot.lane.b32.xlu0 %v619, 1
      %v667 = vpop.permute.xlu0 %666
      %vm684 = vcmask 7168
      %v685 = vsel %vm684, 0.0, %v637
      %v686 = vsel %vm684, 0.0, %v639
      %v687 = vsel %vm684, 0.0, %v641
      %v688 = vsel %vm684, 0.0, %v643
      %v689 = vsel %vm684, 0.0, %v645
      %v690 = vsel %vm684, 0.0, %v647
      %v691 = vsel %vm684, 0.0, %v649
      %v692 = vsel %vm684, 0.0, %v651
      %v693 = vsel %vm684, 0.0, %v653
      %v694 = vsel %vm684, 0.0, %v655
      %v695 = vsel %vm684, 0.0, %v657
      %v696 = vsel %vm684, 0.0, %v659
      %v697 = vsel %vm684, 0.0, %v661
      %v698 = vsel %vm684, 0.0, %v663
      %v699 = vsel %vm684, 0.0, %v665
      %v700 = vsel %vm684, 0.0, %v667
      %701 = vrot.lane.b32.xlu0 %v604, 127
      %v702 = vpop.permute.xlu0 %701
      %703 = vrot.lane.b32.xlu0 %v605, 127
      %v704 = vpop.permute.xlu0 %703
      %705 = vrot.lane.b32.xlu0 %v606, 127
      %v706 = vpop.permute.xlu0 %705
      %707 = vrot.lane.b32.xlu0 %v607, 127
      %v708 = vpop.permute.xlu0 %707
      %709 = vrot.lane.b32.xlu0 %v608, 127
      %v710 = vpop.permute.xlu0 %709
      %711 = vrot.lane.b32.xlu0 %v609, 127
      %v712 = vpop.permute.xlu0 %711
      %713 = vrot.lane.b32.xlu0 %v610, 127
      %v714 = vpop.permute.xlu0 %713
      %715 = vrot.lane.b32.xlu0 %v611, 127
      %v716 = vpop.permute.xlu0 %715
      %717 = vrot.lane.b32.xlu0 %v612, 127
      %v718 = vpop.permute.xlu0 %717
      %719 = vrot.lane.b32.xlu0 %v613, 127
      %v720 = vpop.permute.xlu0 %719
      %721 = vrot.lane.b32.xlu0 %v614, 127
      %v722 = vpop.permute.xlu0 %721
      %723 = vrot.lane.b32.xlu0 %v615, 127
      %v724 = vpop.permute.xlu0 %723
      %725 = vrot.lane.b32.xlu0 %v616, 127
      %v726 = vpop.permute.xlu0 %725
      %727 = vrot.lane.b32.xlu0 %v617, 127
      %v728 = vpop.permute.xlu0 %727
      %729 = vrot.lane.b32.xlu0 %v618, 127
      %v730 = vpop.permute.xlu0 %729
      %731 = vrot.lane.b32.xlu0 %v619, 127
      %v732 = vpop.permute.xlu0 %731
      %vm749 = vcmask 515072
      %v750 = vsel %vm749, %v702, 0.0
      %v751 = vsel %vm749, %v704, 0.0
      %v752 = vsel %vm749, %v706, 0.0
      %v753 = vsel %vm749, %v708, 0.0
      %v754 = vsel %vm749, %v710, 0.0
      %v755 = vsel %vm749, %v712, 0.0
      %v756 = vsel %vm749, %v714, 0.0
      %v757 = vsel %vm749, %v716, 0.0
      %v758 = vsel %vm749, %v718, 0.0
      %v759 = vsel %vm749, %v720, 0.0
      %v760 = vsel %vm749, %v722, 0.0
      %v761 = vsel %vm749, %v724, 0.0
      %v762 = vsel %vm749, %v726, 0.0
      %v763 = vsel %vm749, %v728, 0.0
      %v764 = vsel %vm749, %v730, 0.0
      %v765 = vsel %vm749, %v732, 0.0
      %v766 = vpack.c.bf16 %v686, %v685
      %v767 = vpack.c.bf16 %v688, %v687
      %v768 = vpack.c.bf16 %v690, %v689
      %v769 = vpack.c.bf16 %v692, %v691
      %v770 = vpack.c.bf16 %v694, %v693
      %v771 = vpack.c.bf16 %v696, %v695
      %v772 = vpack.c.bf16 %v698, %v697
      %v773 = vpack.c.bf16 %v700, %v699
      %v774 = vpack.c.bf16 %v605, %v604
      %v775 = vpack.c.bf16 %v607, %v606
      %v776 = vpack.c.bf16 %v609, %v608
      %v777 = vpack.c.bf16 %v611, %v610
      %v778 = vpack.c.bf16 %v613, %v612
      %v779 = vpack.c.bf16 %v615, %v614
      %v780 = vpack.c.bf16 %v617, %v616
      %v781 = vpack.c.bf16 %v619, %v618
      %v782 = vpack.c.bf16 %v751, %v750
      %v783 = vpack.c.bf16 %v753, %v752
      %v784 = vpack.c.bf16 %v755, %v754
      %v785 = vpack.c.bf16 %v757, %v756
      %v786 = vpack.c.bf16 %v759, %v758
      %v787 = vpack.c.bf16 %v761, %v760
      %v788 = vpack.c.bf16 %v763, %v762
      %v789 = vpack.c.bf16 %v765, %v764
      %v790 = vld [vmem:[%s1] sm:$0xff]
      %v791 = vld [vmem:[%s1 + $0x8] sm:$0xf]
      %v792 = vld [vmem:[%s1 + $0xc] sm:$0xff]
      %v793 = vld [vmem:[%s1 + $0x14] sm:$0xf]
      %v794 = vld [vmem:[%s1 + $0x18] sm:$0xff]
      %v795 = vld [vmem:[%s1 + $0x20] sm:$0xf]
      %v796 = vld [vmem:[%s1 + $0x24] sm:$0xff]
      %v797 = vld [vmem:[%s1 + $0x2c] sm:$0xf]
      %v798 = vld [vmem:[%s1 + $0x30] sm:$0xff]
      %v799 = vld [vmem:[%s1 + $0x38] sm:$0xf]
      %v800 = vld [vmem:[%s1 + $0x3c] sm:$0xff]
      %v801 = vld [vmem:[%s1 + $0x44] sm:$0xf]
      %v802 = vld [vmem:[%s1 + $0x48] sm:$0xff]
      %v803 = vld [vmem:[%s1 + $0x50] sm:$0xf]
      %v804 = vld [vmem:[%s1 + $0x54] sm:$0xff]
      %v805 = vld [vmem:[%s1 + $0x5c] sm:$0xf]
      %v806 = vld [vmem:[%s1 + $0x60] sm:$0xff]
      %v807 = vld [vmem:[%s1 + $0x68] sm:$0xf]
      %v808 = vld [vmem:[%s1 + $0x6c] sm:$0xff]
      %v809 = vld [vmem:[%s1 + $0x74] sm:$0xf]
      %v810 = vld [vmem:[%s1 + $0x78] sm:$0xff]
      %v811 = vld [vmem:[%s1 + $0x80] sm:$0xf]
      %v812 = vld [vmem:[%s1 + $0x84] sm:$0xff]
      %v813 = vld [vmem:[%s1 + $0x8c] sm:$0xf]
      %v814 = vld [vmem:[%s1 + $0x90] sm:$0xff]
      %v815 = vld [vmem:[%s1 + $0x98] sm:$0xf]
      %v816 = vld [vmem:[%s1 + $0x9c] sm:$0xff]
      %v817 = vld [vmem:[%s1 + $0xa4] sm:$0xf]
      %v818 = vld [vmem:[%s1 + $0xa8] sm:$0xff]
      %v819 = vld [vmem:[%s1 + $0xb0] sm:$0xf]
      %v820 = vld [vmem:[%s1 + $0xb4] sm:$0xff]
      %v821 = vld [vmem:[%s1 + $0xbc] sm:$0xf]
      %v854 = vunpack.c.l.b16 %v790
      %v855 = vunpack.c.h.b16 %v790
      %v856 = vunpack.c.l.b16 %v791
      %v857 = vunpack.c.l.b16 %v792
      %v858 = vunpack.c.h.b16 %v792
      %v859 = vunpack.c.l.b16 %v793
      %v860 = vunpack.c.l.b16 %v794
      %v861 = vunpack.c.h.b16 %v794
      %v862 = vunpack.c.l.b16 %v795
      %v863 = vunpack.c.l.b16 %v796
      %v864 = vunpack.c.h.b16 %v796
      %v865 = vunpack.c.l.b16 %v797
      %v866 = vunpack.c.l.b16 %v798
      %v867 = vunpack.c.h.b16 %v798
      %v868 = vunpack.c.l.b16 %v799
      %v869 = vunpack.c.l.b16 %v800
      %v870 = vunpack.c.h.b16 %v800
      %v871 = vunpack.c.l.b16 %v801
      %v872 = vunpack.c.l.b16 %v802
      %v873 = vunpack.c.h.b16 %v802
      %v874 = vunpack.c.l.b16 %v803
      %v875 = vunpack.c.l.b16 %v804
      %v876 = vunpack.c.h.b16 %v804
      %v877 = vunpack.c.l.b16 %v805
      %v878 = vunpack.c.l.b16 %v806
      %v879 = vunpack.c.h.b16 %v806
      %v880 = vunpack.c.l.b16 %v807
      %v881 = vunpack.c.l.b16 %v808
      %v882 = vunpack.c.h.b16 %v808
      %v883 = vunpack.c.l.b16 %v809
      %v884 = vunpack.c.l.b16 %v810
      %v885 = vunpack.c.h.b16 %v810
      %v886 = vunpack.c.l.b16 %v811
      %v887 = vunpack.c.l.b16 %v812
      %v888 = vunpack.c.h.b16 %v812
      %v889 = vunpack.c.l.b16 %v813
      %v890 = vunpack.c.l.b16 %v814
      %v891 = vunpack.c.h.b16 %v814
      %v892 = vunpack.c.l.b16 %v815
      %v893 = vunpack.c.l.b16 %v816
      %v894 = vunpack.c.h.b16 %v816
      %v895 = vunpack.c.l.b16 %v817
      %v896 = vunpack.c.l.b16 %v818
      %v897 = vunpack.c.h.b16 %v818
      %v898 = vunpack.c.l.b16 %v819
      %v899 = vunpack.c.l.b16 %v820
      %v900 = vunpack.c.h.b16 %v820
      %v901 = vunpack.c.l.b16 %v821
      %v902 = vpack.c.b16 %v857, %v854
      %v903 = vpack.c.b16 %v858, %v855
      %v904 = vpack.c.b16 %v859, %v856
      %v905 = vpack.c.b16 %v863, %v860
      %v906 = vpack.c.b16 %v864, %v861
      %v907 = vpack.c.b16 %v865, %v862
      %v908 = vpack.c.b16 %v869, %v866
      %v909 = vpack.c.b16 %v870, %v867
      %v910 = vpack.c.b16 %v871, %v868
      %v911 = vpack.c.b16 %v875, %v872
      %v912 = vpack.c.b16 %v876, %v873
      %v913 = vpack.c.b16 %v877, %v874
      %v914 = vpack.c.b16 %v881, %v878
      %v915 = vpack.c.b16 %v882, %v879
      %v916 = vpack.c.b16 %v883, %v880
      %v917 = vpack.c.b16 %v887, %v884
      %v918 = vpack.c.b16 %v888, %v885
      %v919 = vpack.c.b16 %v889, %v886
      %v920 = vpack.c.b16 %v893, %v890
      %v921 = vpack.c.b16 %v894, %v891
      %v922 = vpack.c.b16 %v895, %v892
      %v923 = vpack.c.b16 %v899, %v896
      %v924 = vpack.c.b16 %v900, %v897
      %v925 = vpack.c.b16 %v901, %v898
      %950 = vmatprep.subr.bf16.mxu0 0
      %951 = vmatpush1.bf16.msra.mxu0 %v773
      %952 = vmatprep.subr.bf16.mxu0 0
      %953 = vmatpush1.bf16.msra.mxu0 %v772
      %954 = vmatprep.subr.bf16.mxu0 0
      %955 = vmatpush1.bf16.msra.mxu0 %v771
      %956 = vmatprep.subr.bf16.mxu0 0
      %957 = vmatpush1.bf16.msra.mxu0 %v770
      %958 = vmatprep.subr.bf16.mxu0 0
      %959 = vmatpush1.bf16.msra.mxu0 %v769
      %960 = vmatprep.subr.bf16.mxu0 0
      %961 = vmatpush1.bf16.msra.mxu0 %v768
      %962 = vmatprep.subr.bf16.mxu0 0
      %963 = vmatpush1.bf16.msra.mxu0 %v767
      %964 = vmatprep.subr.bf16.mxu0 0
      %965 = vmatpush1.bf16.msra.mxu0 %v766
      %966 = vmatprep.subr.bf16.mxu0 0
      %967 = vmatpush2.bf16.msra.mxu0 %v781
      %968 = vmatprep.subr.bf16.mxu0 0
      %969 = vmatpush2.bf16.msra.mxu0 %v780
      %970 = vmatprep.subr.bf16.mxu0 0
      %971 = vmatpush2.bf16.msra.mxu0 %v779
      %972 = vmatprep.subr.bf16.mxu0 0
      %973 = vmatpush2.bf16.msra.mxu0 %v778
      %974 = vmatprep.subr.bf16.mxu0 0
      %975 = vmatpush2.bf16.msra.mxu0 %v777
      %976 = vmatprep.subr.bf16.mxu0 0
      %977 = vmatpush2.bf16.msra.mxu0 %v776
      %978 = vmatprep.subr.bf16.mxu0 0
      %979 = vmatpush2.bf16.msra.mxu0 %v775
      %980 = vmatprep.subr.bf16.mxu0 0
      %981 = vmatpush2.bf16.msra.mxu0 %v774
      %982 = vmatprep.mubr.bf16.mxu0 %v903
      %983 = vmatmul.mubr.bf16.gmra.mxu0 %v902
      %v984 = vpop.f32.mrf.mxu0
      %v985 = vadd.f32 0.0, %v984
      %v986 = vpop.f32.mrf.mxu0
      %v987 = vpop.f32.mrf.mxu0
      %v988 = vadd.f32 0.0, %v987
      %v989 = vpop.f32.mrf.mxu0
      %990 = vmatprep.mubr.bf16.mxu0 %v906
      %991 = vmatmul.mubr.bf16.gmra.mxu0 %v905
      %v992 = vpop.f32.mrf.mxu0
      %v993 = vadd.f32 0.0, %v992
      %v994 = vpop.f32.mrf.mxu0
      %v995 = vpop.f32.mrf.mxu0
      %v996 = vadd.f32 0.0, %v995
      %v997 = vpop.f32.mrf.mxu0
      %998 = vmatprep.mubr.bf16.mxu0 %v909
      %999 = vmatmul.mubr.bf16.gmra.mxu0 %v908
      %v1000 = vpop.f32.mrf.mxu0
      %v1001 = vadd.f32 0.0, %v1000
      %v1002 = vpop.f32.mrf.mxu0
      %v1003 = vpop.f32.mrf.mxu0
      %v1004 = vadd.f32 0.0, %v1003
      %v1005 = vpop.f32.mrf.mxu0
      %1006 = vmatprep.mubr.bf16.mxu0 %v912
      %1007 = vmatmul.mubr.bf16.gmra.mxu0 %v911
      %v1008 = vpop.f32.mrf.mxu0
      %v1009 = vadd.f32 0.0, %v1008
      %v1010 = vpop.f32.mrf.mxu0
      %v1011 = vpop.f32.mrf.mxu0
      %v1012 = vadd.f32 0.0, %v1011
      %v1013 = vpop.f32.mrf.mxu0
      %1014 = vmatprep.mubr.bf16.mxu0 %v915
      %1015 = vmatmul.mubr.bf16.gmra.mxu0 %v914
      %v1016 = vpop.f32.mrf.mxu0
      %v1017 = vadd.f32 0.0, %v1016
      %v1018 = vpop.f32.mrf.mxu0
      %v1019 = vpop.f32.mrf.mxu0
      %v1020 = vadd.f32 0.0, %v1019
      %v1021 = vpop.f32.mrf.mxu0
      %1022 = vmatprep.mubr.bf16.mxu0 %v918
      %1023 = vmatmul.mubr.bf16.gmra.mxu0 %v917
      %v1024 = vpop.f32.mrf.mxu0
      %v1025 = vadd.f32 0.0, %v1024
      %v1026 = vpop.f32.mrf.mxu0
      %v1027 = vpop.f32.mrf.mxu0
      %v1028 = vadd.f32 0.0, %v1027
      %v1029 = vpop.f32.mrf.mxu0
      %1030 = vmatprep.mubr.bf16.mxu0 %v921
      %1031 = vmatmul.mubr.bf16.gmra.mxu0 %v920
      %v1032 = vpop.f32.mrf.mxu0
      %v1033 = vadd.f32 0.0, %v1032
      %v1034 = vpop.f32.mrf.mxu0
      %v1035 = vpop.f32.mrf.mxu0
      %v1036 = vadd.f32 0.0, %v1035
      %v1037 = vpop.f32.mrf.mxu0
      %1038 = vmatprep.mubr.bf16.mxu0 %v924
      %1039 = vmatmul.mubr.bf16.gmra.mxu0 %v923
      %v1040 = vpop.f32.mrf.mxu0
      %v1041 = vadd.f32 0.0, %v1040
      %v1042 = vpop.f32.mrf.mxu0
      %v1043 = vpop.f32.mrf.mxu0
      %v1044 = vadd.f32 0.0, %v1043
      %v1045 = vpop.f32.mrf.mxu0
      %1046 = vdwg.mxu0
      %1047 = vmatprep.subr.bf16.mxu0 0
      %1048 = vmatpush1.bf16.msra.mxu0 %v789
      %1049 = vmatprep.subr.bf16.mxu0 0
      %1050 = vmatpush1.bf16.msra.mxu0 %v788
      %1051 = vmatprep.subr.bf16.mxu0 0
      %1052 = vmatpush1.bf16.msra.mxu0 %v787
      %1053 = vmatprep.subr.bf16.mxu0 0
      %1054 = vmatpush1.bf16.msra.mxu0 %v786
      %1055 = vmatprep.subr.bf16.mxu0 0
      %1056 = vmatpush1.bf16.msra.mxu0 %v785
      %1057 = vmatprep.subr.bf16.mxu0 0
      %1058 = vmatpush1.bf16.msra.mxu0 %v784
      %1059 = vmatprep.subr.bf16.mxu0 0
      %1060 = vmatpush1.bf16.msra.mxu0 %v783
      %1061 = vmatprep.subr.bf16.mxu0 0
      %1062 = vmatpush1.bf16.msra.mxu0 %v782
      %1063 = vmatprep.subr.bf16.mxu0 0
      %1064 = vmatpush2.bf16.msra.mxu0 0
      %1065 = vmatprep.subr.bf16.mxu0 0
      %1066 = vmatpush2.bf16.msra.mxu0 0
      %1067 = vmatprep.subr.bf16.mxu0 0
      %1068 = vmatpush2.bf16.msra.mxu0 0
      %1069 = vmatprep.subr.bf16.mxu0 0
      %1070 = vmatpush2.bf16.msra.mxu0 0
      %1071 = vmatprep.subr.bf16.mxu0 0
      %1072 = vmatpush2.bf16.msra.mxu0 0
      %1073 = vmatprep.subr.bf16.mxu0 0
      %1074 = vmatpush2.bf16.msra.mxu0 0
      %1075 = vmatprep.subr.bf16.mxu0 0
      %1076 = vmatpush2.bf16.msra.mxu0 0
      %1077 = vmatprep.subr.bf16.mxu0 0
      %1078 = vmatpush2.bf16.msra.mxu0 0
      %1079 = vmatprep.mubr.bf16.mxu0 0
      %1080 = vmatmul.mubr.bf16.gmra.mxu0 %v904
      %v1081 = vpop.f32.mrf.mxu0
      %v1082 = vadd.f32 %v985, %v1081
      %v1083 = vpop.f32.mrf.mxu0
      %v1084 = vpop.f32.mrf.mxu0
      %v1085 = vadd.f32 %v988, %v1084
      %v1086 = vpop.f32.mrf.mxu0
      %1087 = vmatprep.mubr.bf16.mxu0 0
      %1088 = vmatmul.mubr.bf16.gmra.mxu0 %v907
      %v1089 = vpop.f32.mrf.mxu0
      %v1090 = vadd.f32 %v993, %v1089
      %v1091 = vpop.f32.mrf.mxu0
      %v1092 = vpop.f32.mrf.mxu0
      %v1093 = vadd.f32 %v996, %v1092
      %v1094 = vpop.f32.mrf.mxu0
      %1095 = vmatprep.mubr.bf16.mxu0 0
      %1096 = vmatmul.mubr.bf16.gmra.mxu0 %v910
      %v1097 = vpop.f32.mrf.mxu0
      %v1098 = vadd.f32 %v1001, %v1097
      %v1099 = vpop.f32.mrf.mxu0
      %v1100 = vpop.f32.mrf.mxu0
      %v1101 = vadd.f32 %v1004, %v1100
      %v1102 = vpop.f32.mrf.mxu0
      %1103 = vmatprep.mubr.bf16.mxu0 0
      %1104 = vmatmul.mubr.bf16.gmra.mxu0 %v913
      %v1105 = vpop.f32.mrf.mxu0
      %v1106 = vadd.f32 %v1009, %v1105
      %v1107 = vpop.f32.mrf.mxu0
      %v1108 = vpop.f32.mrf.mxu0
      %v1109 = vadd.f32 %v1012, %v1108
      %v1110 = vpop.f32.mrf.mxu0
      %1111 = vmatprep.mubr.bf16.mxu0 0
      %1112 = vmatmul.mubr.bf16.gmra.mxu0 %v916
      %v1113 = vpop.f32.mrf.mxu0
      %v1114 = vadd.f32 %v1017, %v1113
      %v1115 = vpop.f32.mrf.mxu0
      %v1116 = vpop.f32.mrf.mxu0
      %v1117 = vadd.f32 %v1020, %v1116
      %v1118 = vpop.f32.mrf.mxu0
      %1119 = vmatprep.mubr.bf16.mxu0 0
      %1120 = vmatmul.mubr.bf16.gmra.mxu0 %v919
      %v1121 = vpop.f32.mrf.mxu0
      %v1122 = vadd.f32 %v1025, %v1121
      %v1123 = vpop.f32.mrf.mxu0
      %v1124 = vpop.f32.mrf.mxu0
      %v1125 = vadd.f32 %v1028, %v1124
      %v1126 = vpop.f32.mrf.mxu0
      %1127 = vmatprep.mubr.bf16.mxu0 0
      %1128 = vmatmul.mubr.bf16.gmra.mxu0 %v922
      %v1129 = vpop.f32.mrf.mxu0
      %v1130 = vadd.f32 %v1033, %v1129
      %v1131 = vpop.f32.mrf.mxu0
      %v1132 = vpop.f32.mrf.mxu0
      %v1133 = vadd.f32 %v1036, %v1132
      %v1134 = vpop.f32.mrf.mxu0
      %1135 = vmatprep.mubr.bf16.mxu0 0
      %1136 = vmatmul.mubr.bf16.gmra.mxu0 %v925
      %v1137 = vpop.f32.mrf.mxu0
      %v1138 = vadd.f32 %v1041, %v1137
      %v1139 = vpop.f32.mrf.mxu0
      %v1140 = vpop.f32.mrf.mxu0
      %v1141 = vadd.f32 %v1044, %v1140
      %v1142 = vpop.f32.mrf.mxu0
      %1143 = vdwg.mxu0
      %v1144 = vld [vmem:[%s2] sm:$0xff]
      %v1145 = vld [vmem:[%s2 + $0x8] sm:$0xff]
      %v1146 = vld [vmem:[%s2 + $0x10] sm:$0xff]
      %v1147 = vld [vmem:[%s2 + $0x18] sm:$0xff]
      %v1148 = vld [vmem:[%s2 + $0x20] sm:$0xff]
      %v1149 = vld [vmem:[%s2 + $0x28] sm:$0xff]
      %v1150 = vld [vmem:[%s2 + $0x30] sm:$0xff]
      %v1151 = vld [vmem:[%s2 + $0x38] sm:$0xff]
      %v1152 = vld [vmem:[%s2 + $0x40] sm:$0xff]
      %v1153 = vld [vmem:[%s2 + $0x48] sm:$0xff]
      %v1154 = vld [vmem:[%s2 + $0x50] sm:$0xff]
      %v1155 = vld [vmem:[%s2 + $0x58] sm:$0xff]
      %v1156 = vld [vmem:[%s2 + $0x60] sm:$0xff]
      %v1157 = vld [vmem:[%s2 + $0x68] sm:$0xff]
      %v1158 = vld [vmem:[%s2 + $0x70] sm:$0xff]
      %v1159 = vld [vmem:[%s2 + $0x78] sm:$0xff]
      %1161 = vset.pattern.permute.xlu0 0
      %1162 = vperm.xlu0 %1161, %v1144
      %v1163 = vpop.permute.xlu0 %1162
      %1166 = vset.pattern.permute.xlu0 0
      %1167 = vperm.xlu0 %1166, %v1145
      %v1168 = vpop.permute.xlu0 %1167
      %1171 = vset.pattern.permute.xlu0 0
      %1172 = vperm.xlu0 %1171, %v1146
      %v1173 = vpop.permute.xlu0 %1172
      %1176 = vset.pattern.permute.xlu0 0
      %1177 = vperm.xlu0 %1176, %v1147
      %v1178 = vpop.permute.xlu0 %1177
      %1181 = vset.pattern.permute.xlu0 0
      %1182 = vperm.xlu0 %1181, %v1148
      %v1183 = vpop.permute.xlu0 %1182
      %1186 = vset.pattern.permute.xlu0 0
      %1187 = vperm.xlu0 %1186, %v1149
      %v1188 = vpop.permute.xlu0 %1187
      %1191 = vset.pattern.permute.xlu0 0
      %1192 = vperm.xlu0 %1191, %v1150
      %v1193 = vpop.permute.xlu0 %1192
      %1196 = vset.pattern.permute.xlu0 0
      %1197 = vperm.xlu0 %1196, %v1151
      %v1198 = vpop.permute.xlu0 %1197
      %1201 = vset.pattern.permute.xlu0 0
      %1202 = vperm.xlu0 %1201, %v1152
      %v1203 = vpop.permute.xlu0 %1202
      %1206 = vset.pattern.permute.xlu0 0
      %1207 = vperm.xlu0 %1206, %v1153
      %v1208 = vpop.permute.xlu0 %1207
      %1211 = vset.pattern.permute.xlu0 0
      %1212 = vperm.xlu0 %1211, %v1154
      %v1213 = vpop.permute.xlu0 %1212
      %1216 = vset.pattern.permute.xlu0 0
      %1217 = vperm.xlu0 %1216, %v1155
      %v1218 = vpop.permute.xlu0 %1217
      %1221 = vset.pattern.permute.xlu0 0
      %1222 = vperm.xlu0 %1221, %v1156
      %v1223 = vpop.permute.xlu0 %1222
      %1226 = vset.pattern.permute.xlu0 0
      %1227 = vperm.xlu0 %1226, %v1157
      %v1228 = vpop.permute.xlu0 %1227
      %1231 = vset.pattern.permute.xlu0 0
      %1232 = vperm.xlu0 %1231, %v1158
      %v1233 = vpop.permute.xlu0 %1232
      %1236 = vset.pattern.permute.xlu0 0
      %1237 = vperm.xlu0 %1236, %v1159
      %v1238 = vpop.permute.xlu0 %1237
      %v1240 = vmul.f32 %v1082, %v1163
      %v1241 = vmul.f32 %v1085, %v1168
      %v1242 = vmul.f32 %v1090, %v1173
      %v1243 = vmul.f32 %v1093, %v1178
      %v1244 = vmul.f32 %v1098, %v1183
      %v1245 = vmul.f32 %v1101, %v1188
      %v1246 = vmul.f32 %v1106, %v1193
      %v1247 = vmul.f32 %v1109, %v1198
      %v1248 = vmul.f32 %v1114, %v1203
      %v1249 = vmul.f32 %v1117, %v1208
      %v1250 = vmul.f32 %v1122, %v1213
      %v1251 = vmul.f32 %v1125, %v1218
      %v1252 = vmul.f32 %v1130, %v1223
      %v1253 = vmul.f32 %v1133, %v1228
      %v1254 = vmul.f32 %v1138, %v1233
      %v1255 = vmul.f32 %v1141, %v1238
      %v1256 = vld [vmem:[%s3] sm:$0xff]
      %v1257 = vld [vmem:[%s3 + $0x8] sm:$0xff]
      %v1258 = vld [vmem:[%s3 + $0x10] sm:$0xff]
      %v1259 = vld [vmem:[%s3 + $0x18] sm:$0xff]
      %v1260 = vld [vmem:[%s3 + $0x20] sm:$0xff]
      %v1261 = vld [vmem:[%s3 + $0x28] sm:$0xff]
      %v1262 = vld [vmem:[%s3 + $0x30] sm:$0xff]
      %v1263 = vld [vmem:[%s3 + $0x38] sm:$0xff]
      %v1264 = vld [vmem:[%s3 + $0x40] sm:$0xff]
      %v1265 = vld [vmem:[%s3 + $0x48] sm:$0xff]
      %v1266 = vld [vmem:[%s3 + $0x50] sm:$0xff]
      %v1267 = vld [vmem:[%s3 + $0x58] sm:$0xff]
      %v1268 = vld [vmem:[%s3 + $0x60] sm:$0xff]
      %v1269 = vld [vmem:[%s3 + $0x68] sm:$0xff]
      %v1270 = vld [vmem:[%s3 + $0x70] sm:$0xff]
      %v1271 = vld [vmem:[%s3 + $0x78] sm:$0xff]
      %1273 = vset.pattern.permute.xlu0 0
      %1274 = vperm.xlu0 %1273, %v1256
      %v1275 = vpop.permute.xlu0 %1274
      %1278 = vset.pattern.permute.xlu0 0
      %1279 = vperm.xlu0 %1278, %v1257
      %v1280 = vpop.permute.xlu0 %1279
      %1283 = vset.pattern.permute.xlu0 0
      %1284 = vperm.xlu0 %1283, %v1258
      %v1285 = vpop.permute.xlu0 %1284
      %1288 = vset.pattern.permute.xlu0 0
      %1289 = vperm.xlu0 %1288, %v1259
      %v1290 = vpop.permute.xlu0 %1289
      %1293 = vset.pattern.permute.xlu0 0
      %1294 = vperm.xlu0 %1293, %v1260
      %v1295 = vpop.permute.xlu0 %1294
      %1298 = vset.pattern.permute.xlu0 0
      %1299 = vperm.xlu0 %1298, %v1261
      %v1300 = vpop.permute.xlu0 %1299
      %1303 = vset.pattern.permute.xlu0 0
      %1304 = vperm.xlu0 %1303, %v1262
      %v1305 = vpop.permute.xlu0 %1304
      %1308 = vset.pattern.permute.xlu0 0
      %1309 = vperm.xlu0 %1308, %v1263
      %v1310 = vpop.permute.xlu0 %1309
      %1313 = vset.pattern.permute.xlu0 0
      %1314 = vperm.xlu0 %1313, %v1264
      %v1315 = vpop.permute.xlu0 %1314
      %1318 = vset.pattern.permute.xlu0 0
      %1319 = vperm.xlu0 %1318, %v1265
      %v1320 = vpop.permute.xlu0 %1319
      %1323 = vset.pattern.permute.xlu0 0
      %1324 = vperm.xlu0 %1323, %v1266
      %v1325 = vpop.permute.xlu0 %1324
      %1328 = vset.pattern.permute.xlu0 0
      %1329 = vperm.xlu0 %1328, %v1267
      %v1330 = vpop.permute.xlu0 %1329
      %1333 = vset.pattern.permute.xlu0 0
      %1334 = vperm.xlu0 %1333, %v1268
      %v1335 = vpop.permute.xlu0 %1334
      %1338 = vset.pattern.permute.xlu0 0
      %1339 = vperm.xlu0 %1338, %v1269
      %v1340 = vpop.permute.xlu0 %1339
      %1343 = vset.pattern.permute.xlu0 0
      %1344 = vperm.xlu0 %1343, %v1270
      %v1345 = vpop.permute.xlu0 %1344
      %1348 = vset.pattern.permute.xlu0 0
      %1349 = vperm.xlu0 %1348, %v1271
      %v1350 = vpop.permute.xlu0 %1349
      %v1352 = vadd.f32 %v1240, %v1275
      %v1353 = vadd.f32 %v1241, %v1280
      %v1354 = vadd.f32 %v1242, %v1285
      %v1355 = vadd.f32 %v1243, %v1290
      %v1356 = vadd.f32 %v1244, %v1295
      %v1357 = vadd.f32 %v1245, %v1300
      %v1358 = vadd.f32 %v1246, %v1305
      %v1359 = vadd.f32 %v1247, %v1310
      %v1360 = vadd.f32 %v1248, %v1315
      %v1361 = vadd.f32 %v1249, %v1320
      %v1362 = vadd.f32 %v1250, %v1325
      %v1363 = vadd.f32 %v1251, %v1330
      %v1364 = vadd.f32 %v1252, %v1335
      %v1365 = vadd.f32 %v1253, %v1340
      %v1366 = vadd.f32 %v1254, %v1345
      %v1367 = vadd.f32 %v1255, %v1350
      %v1368 = vmax.f32 %v1352, 0.0
      %v1369 = vmax.f32 %v1353, 0.0
      %v1370 = vmax.f32 %v1354, 0.0
      %v1371 = vmax.f32 %v1355, 0.0
      %v1372 = vmax.f32 %v1356, 0.0
      %v1373 = vmax.f32 %v1357, 0.0
      %v1374 = vmax.f32 %v1358, 0.0
      %v1375 = vmax.f32 %v1359, 0.0
      %v1376 = vmax.f32 %v1360, 0.0
      %v1377 = vmax.f32 %v1361, 0.0
      %v1378 = vmax.f32 %v1362, 0.0
      %v1379 = vmax.f32 %v1363, 0.0
      %v1380 = vmax.f32 %v1364, 0.0
      %v1381 = vmax.f32 %v1365, 0.0
      %v1382 = vmax.f32 %v1366, 0.0
      %v1383 = vmax.f32 %v1367, 0.0
      %1400 = vrot.lane.b32.xlu0 %v1368, 127
      %v1401 = vpop.permute.xlu0 %1400
      %1402 = vrot.lane.b32.xlu0 %v1369, 127
      %v1403 = vpop.permute.xlu0 %1402
      %1404 = vrot.lane.b32.xlu0 %v1370, 127
      %v1405 = vpop.permute.xlu0 %1404
      %1406 = vrot.lane.b32.xlu0 %v1371, 127
      %v1407 = vpop.permute.xlu0 %1406
      %1408 = vrot.lane.b32.xlu0 %v1372, 127
      %v1409 = vpop.permute.xlu0 %1408
      %1410 = vrot.lane.b32.xlu0 %v1373, 127
      %v1411 = vpop.permute.xlu0 %1410
      %1412 = vrot.lane.b32.xlu0 %v1374, 127
      %v1413 = vpop.permute.xlu0 %1412
      %1414 = vrot.lane.b32.xlu0 %v1375, 127
      %v1415 = vpop.permute.xlu0 %1414
      %1416 = vrot.lane.b32.xlu0 %v1376, 127
      %v1417 = vpop.permute.xlu0 %1416
      %1418 = vrot.lane.b32.xlu0 %v1377, 127
      %v1419 = vpop.permute.xlu0 %1418
      %1420 = vrot.lane.b32.xlu0 %v1378, 127
      %v1421 = vpop.permute.xlu0 %1420
      %1422 = vrot.lane.b32.xlu0 %v1379, 127
      %v1423 = vpop.permute.xlu0 %1422
      %1424 = vrot.lane.b32.xlu0 %v1380, 127
      %v1425 = vpop.permute.xlu0 %1424
      %1426 = vrot.lane.b32.xlu0 %v1381, 127
      %v1427 = vpop.permute.xlu0 %1426
      %1428 = vrot.lane.b32.xlu0 %v1382, 127
      %v1429 = vpop.permute.xlu0 %1428
      %1430 = vrot.lane.b32.xlu0 %v1383, 127
      %v1431 = vpop.permute.xlu0 %1430
      %v1448 = vsel %vm749, %v1401, 0.0
      %v1449 = vsel %vm749, %v1403, 0.0
      %v1450 = vsel %vm749, %v1405, 0.0
      %v1451 = vsel %vm749, %v1407, 0.0
      %v1452 = vsel %vm749, %v1409, 0.0
      %v1453 = vsel %vm749, %v1411, 0.0
      %v1454 = vsel %vm749, %v1413, 0.0
      %v1455 = vsel %vm749, %v1415, 0.0
      %v1456 = vsel %vm749, %v1417, 0.0
      %v1457 = vsel %vm749, %v1419, 0.0
      %v1458 = vsel %vm749, %v1421, 0.0
      %v1459 = vsel %vm749, %v1423, 0.0
      %v1460 = vsel %vm749, %v1425, 0.0
      %v1461 = vsel %vm749, %v1427, 0.0
      %v1462 = vsel %vm749, %v1429, 0.0
      %v1463 = vsel %vm749, %v1431, 0.0
      %v1464 = vmax.f32 %v1368, %v1448
      %v1465 = vmax.f32 %v1369, %v1449
      %v1466 = vmax.f32 %v1370, %v1450
      %v1467 = vmax.f32 %v1371, %v1451
      %v1468 = vmax.f32 %v1372, %v1452
      %v1469 = vmax.f32 %v1373, %v1453
      %v1470 = vmax.f32 %v1374, %v1454
      %v1471 = vmax.f32 %v1375, %v1455
      %v1472 = vmax.f32 %v1376, %v1456
      %v1473 = vmax.f32 %v1377, %v1457
      %v1474 = vmax.f32 %v1378, %v1458
      %v1475 = vmax.f32 %v1379, %v1459
      %v1476 = vmax.f32 %v1380, %v1460
      %v1477 = vmax.f32 %v1381, %v1461
      %v1478 = vmax.f32 %v1382, %v1462
      %v1479 = vmax.f32 %v1383, %v1463
      %1496 = vrot.lane.b32.xlu0 %v1464, 2
      %v1497 = vpop.permute.xlu0 %1496
      %1498 = vrot.lane.b32.xlu0 %v1465, 2
      %v1499 = vpop.permute.xlu0 %1498
      %1500 = vrot.lane.b32.xlu0 %v1466, 2
      %v1501 = vpop.permute.xlu0 %1500
      %1502 = vrot.lane.b32.xlu0 %v1467, 2
      %v1503 = vpop.permute.xlu0 %1502
      %1504 = vrot.lane.b32.xlu0 %v1468, 2
      %v1505 = vpop.permute.xlu0 %1504
      %1506 = vrot.lane.b32.xlu0 %v1469, 2
      %v1507 = vpop.permute.xlu0 %1506
      %1508 = vrot.lane.b32.xlu0 %v1470, 2
      %v1509 = vpop.permute.xlu0 %1508
      %1510 = vrot.lane.b32.xlu0 %v1471, 2
      %v1511 = vpop.permute.xlu0 %1510
      %1512 = vrot.lane.b32.xlu0 %v1472, 2
      %v1513 = vpop.permute.xlu0 %1512
      %1514 = vrot.lane.b32.xlu0 %v1473, 2
      %v1515 = vpop.permute.xlu0 %1514
      %1516 = vrot.lane.b32.xlu0 %v1474, 2
      %v1517 = vpop.permute.xlu0 %1516
      %1518 = vrot.lane.b32.xlu0 %v1475, 2
      %v1519 = vpop.permute.xlu0 %1518
      %1520 = vrot.lane.b32.xlu0 %v1476, 2
      %v1521 = vpop.permute.xlu0 %1520
      %1522 = vrot.lane.b32.xlu0 %v1477, 2
      %v1523 = vpop.permute.xlu0 %1522
      %1524 = vrot.lane.b32.xlu0 %v1478, 2
      %v1525 = vpop.permute.xlu0 %1524
      %1526 = vrot.lane.b32.xlu0 %v1479, 2
      %v1527 = vpop.permute.xlu0 %1526
      %vm1544 = vcmask 15360
      %v1545 = vsel %vm1544, 0.0, %v1497
      %v1546 = vsel %vm1544, 0.0, %v1499
      %v1547 = vsel %vm1544, 0.0, %v1501
      %v1548 = vsel %vm1544, 0.0, %v1503
      %v1549 = vsel %vm1544, 0.0, %v1505
      %v1550 = vsel %vm1544, 0.0, %v1507
      %v1551 = vsel %vm1544, 0.0, %v1509
      %v1552 = vsel %vm1544, 0.0, %v1511
      %v1553 = vsel %vm1544, 0.0, %v1513
      %v1554 = vsel %vm1544, 0.0, %v1515
      %v1555 = vsel %vm1544, 0.0, %v1517
      %v1556 = vsel %vm1544, 0.0, %v1519
      %v1557 = vsel %vm1544, 0.0, %v1521
      %v1558 = vsel %vm1544, 0.0, %v1523
      %v1559 = vsel %vm1544, 0.0, %v1525
      %v1560 = vsel %vm1544, 0.0, %v1527
      %1561 = vrot.lane.b32.xlu0 %v1464, 126
      %v1562 = vpop.permute.xlu0 %1561
      %1563 = vrot.lane.b32.xlu0 %v1465, 126
      %v1564 = vpop.permute.xlu0 %1563
      %1565 = vrot.lane.b32.xlu0 %v1466, 126
      %v1566 = vpop.permute.xlu0 %1565
      %1567 = vrot.lane.b32.xlu0 %v1467, 126
      %v1568 = vpop.permute.xlu0 %1567
      %1569 = vrot.lane.b32.xlu0 %v1468, 126
      %v1570 = vpop.permute.xlu0 %1569
      %1571 = vrot.lane.b32.xlu0 %v1469, 126
      %v1572 = vpop.permute.xlu0 %1571
      %1573 = vrot.lane.b32.xlu0 %v1470, 126
      %v1574 = vpop.permute.xlu0 %1573
      %1575 = vrot.lane.b32.xlu0 %v1471, 126
      %v1576 = vpop.permute.xlu0 %1575
      %1577 = vrot.lane.b32.xlu0 %v1472, 126
      %v1578 = vpop.permute.xlu0 %1577
      %1579 = vrot.lane.b32.xlu0 %v1473, 126
      %v1580 = vpop.permute.xlu0 %1579
      %1581 = vrot.lane.b32.xlu0 %v1474, 126
      %v1582 = vpop.permute.xlu0 %1581
      %1583 = vrot.lane.b32.xlu0 %v1475, 126
      %v1584 = vpop.permute.xlu0 %1583
      %1585 = vrot.lane.b32.xlu0 %v1476, 126
      %v1586 = vpop.permute.xlu0 %1585
      %1587 = vrot.lane.b32.xlu0 %v1477, 126
      %v1588 = vpop.permute.xlu0 %1587
      %1589 = vrot.lane.b32.xlu0 %v1478, 126
      %v1590 = vpop.permute.xlu0 %1589
      %1591 = vrot.lane.b32.xlu0 %v1479, 126
      %v1592 = vpop.permute.xlu0 %1591
      %vm1609 = vcmask 506880
      %v1610 = vsel %vm1609, %v1562, 0.0
      %v1611 = vsel %vm1609, %v1564, 0.0
      %v1612 = vsel %vm1609, %v1566, 0.0
      %v1613 = vsel %vm1609, %v1568, 0.0
      %v1614 = vsel %vm1609, %v1570, 0.0
      %v1615 = vsel %vm1609, %v1572, 0.0
      %v1616 = vsel %vm1609, %v1574, 0.0
      %v1617 = vsel %vm1609, %v1576, 0.0
      %v1618 = vsel %vm1609, %v1578, 0.0
      %v1619 = vsel %vm1609, %v1580, 0.0
      %v1620 = vsel %vm1609, %v1582, 0.0
      %v1621 = vsel %vm1609, %v1584, 0.0
      %v1622 = vsel %vm1609, %v1586, 0.0
      %v1623 = vsel %vm1609, %v1588, 0.0
      %v1624 = vsel %vm1609, %v1590, 0.0
      %v1625 = vsel %vm1609, %v1592, 0.0
      %v1626 = vpack.c.bf16 %v1546, %v1545
      %v1627 = vpack.c.bf16 %v1548, %v1547
      %v1628 = vpack.c.bf16 %v1550, %v1549
      %v1629 = vpack.c.bf16 %v1552, %v1551
      %v1630 = vpack.c.bf16 %v1554, %v1553
      %v1631 = vpack.c.bf16 %v1556, %v1555
      %v1632 = vpack.c.bf16 %v1558, %v1557
      %v1633 = vpack.c.bf16 %v1560, %v1559
      %v1634 = vpack.c.bf16 %v1465, %v1464
      %v1635 = vpack.c.bf16 %v1467, %v1466
      %v1636 = vpack.c.bf16 %v1469, %v1468
      %v1637 = vpack.c.bf16 %v1471, %v1470
      %v1638 = vpack.c.bf16 %v1473, %v1472
      %v1639 = vpack.c.bf16 %v1475, %v1474
      %v1640 = vpack.c.bf16 %v1477, %v1476
      %v1641 = vpack.c.bf16 %v1479, %v1478
      %v1642 = vpack.c.bf16 %v1611, %v1610
      %v1643 = vpack.c.bf16 %v1613, %v1612
      %v1644 = vpack.c.bf16 %v1615, %v1614
      %v1645 = vpack.c.bf16 %v1617, %v1616
      %v1646 = vpack.c.bf16 %v1619, %v1618
      %v1647 = vpack.c.bf16 %v1621, %v1620
      %v1648 = vpack.c.bf16 %v1623, %v1622
      %v1649 = vpack.c.bf16 %v1625, %v1624
      %v1650 = vld [vmem:[%s4] sm:$0xff]
      %v1651 = vld [vmem:[%s4 + $0x8] sm:$0xf]
      %v1652 = vld [vmem:[%s4 + $0xc] sm:$0xff]
      %v1653 = vld [vmem:[%s4 + $0x14] sm:$0xf]
      %v1654 = vld [vmem:[%s4 + $0x18] sm:$0xff]
      %v1655 = vld [vmem:[%s4 + $0x20] sm:$0xf]
      %v1656 = vld [vmem:[%s4 + $0x24] sm:$0xff]
      %v1657 = vld [vmem:[%s4 + $0x2c] sm:$0xf]
      %v1658 = vld [vmem:[%s4 + $0x30] sm:$0xff]
      %v1659 = vld [vmem:[%s4 + $0x38] sm:$0xf]
      %v1660 = vld [vmem:[%s4 + $0x3c] sm:$0xff]
      %v1661 = vld [vmem:[%s4 + $0x44] sm:$0xf]
      %v1662 = vld [vmem:[%s4 + $0x48] sm:$0xff]
      %v1663 = vld [vmem:[%s4 + $0x50] sm:$0xf]
      %v1664 = vld [vmem:[%s4 + $0x54] sm:$0xff]
      %v1665 = vld [vmem:[%s4 + $0x5c] sm:$0xf]
      %v1682 = vunpack.c.l.b16 %v1650
      %v1683 = vunpack.c.h.b16 %v1650
      %v1684 = vunpack.c.l.b16 %v1651
      %v1685 = vunpack.c.l.b16 %v1652
      %v1686 = vunpack.c.h.b16 %v1652
      %v1687 = vunpack.c.l.b16 %v1653
      %v1688 = vunpack.c.l.b16 %v1654
      %v1689 = vunpack.c.h.b16 %v1654
      %v1690 = vunpack.c.l.b16 %v1655
      %v1691 = vunpack.c.l.b16 %v1656
      %v1692 = vunpack.c.h.b16 %v1656
      %v1693 = vunpack.c.l.b16 %v1657
      %v1694 = vunpack.c.l.b16 %v1658
      %v1695 = vunpack.c.h.b16 %v1658
      %v1696 = vunpack.c.l.b16 %v1659
      %v1697 = vunpack.c.l.b16 %v1660
      %v1698 = vunpack.c.h.b16 %v1660
      %v1699 = vunpack.c.l.b16 %v1661
      %v1700 = vunpack.c.l.b16 %v1662
      %v1701 = vunpack.c.h.b16 %v1662
      %v1702 = vunpack.c.l.b16 %v1663
      %v1703 = vunpack.c.l.b16 %v1664
      %v1704 = vunpack.c.h.b16 %v1664
      %v1705 = vunpack.c.l.b16 %v1665
      %v1706 = vpack.c.b16 %v1685, %v1682
      %v1707 = vpack.c.b16 %v1686, %v1683
      %v1708 = vpack.c.b16 %v1687, %v1684
      %v1709 = vpack.c.b16 %v1691, %v1688
      %v1710 = vpack.c.b16 %v1692, %v1689
      %v1711 = vpack.c.b16 %v1693, %v1690
      %v1712 = vpack.c.b16 %v1697, %v1694
      %v1713 = vpack.c.b16 %v1698, %v1695
      %v1714 = vpack.c.b16 %v1699, %v1696
      %v1715 = vpack.c.b16 %v1703, %v1700
      %v1716 = vpack.c.b16 %v1704, %v1701
      %v1717 = vpack.c.b16 %v1705, %v1702
      %1730 = vmatprep.subr.bf16.mxu0 0
      %1731 = vmatpush1.bf16.msra.mxu0 %v1633
      %1732 = vmatprep.subr.bf16.mxu0 0
      %1733 = vmatpush1.bf16.msra.mxu0 %v1632
      %1734 = vmatprep.subr.bf16.mxu0 0
      %1735 = vmatpush1.bf16.msra.mxu0 %v1631
      %1736 = vmatprep.subr.bf16.mxu0 0
      %1737 = vmatpush1.bf16.msra.mxu0 %v1630
      %1738 = vmatprep.subr.bf16.mxu0 0
      %1739 = vmatpush1.bf16.msra.mxu0 %v1629
      %1740 = vmatprep.subr.bf16.mxu0 0
      %1741 = vmatpush1.bf16.msra.mxu0 %v1628
      %1742 = vmatprep.subr.bf16.mxu0 0
      %1743 = vmatpush1.bf16.msra.mxu0 %v1627
      %1744 = vmatprep.subr.bf16.mxu0 0
      %1745 = vmatpush1.bf16.msra.mxu0 %v1626
      %1746 = vmatprep.subr.bf16.mxu0 0
      %1747 = vmatpush2.bf16.msra.mxu0 %v1641
      %1748 = vmatprep.subr.bf16.mxu0 0
      %1749 = vmatpush2.bf16.msra.mxu0 %v1640
      %1750 = vmatprep.subr.bf16.mxu0 0
      %1751 = vmatpush2.bf16.msra.mxu0 %v1639
      %1752 = vmatprep.subr.bf16.mxu0 0
      %1753 = vmatpush2.bf16.msra.mxu0 %v1638
      %1754 = vmatprep.subr.bf16.mxu0 0
      %1755 = vmatpush2.bf16.msra.mxu0 %v1637
      %1756 = vmatprep.subr.bf16.mxu0 0
      %1757 = vmatpush2.bf16.msra.mxu0 %v1636
      %1758 = vmatprep.subr.bf16.mxu0 0
      %1759 = vmatpush2.bf16.msra.mxu0 %v1635
      %1760 = vmatprep.subr.bf16.mxu0 0
      %1761 = vmatpush2.bf16.msra.mxu0 %v1634
      %1762 = vmatprep.mubr.bf16.mxu0 %v1707
      %1763 = vmatmul.mubr.bf16.gmra.mxu0 %v1706
      %v1764 = vpop.f32.mrf.mxu0
      %v1765 = vadd.f32 0.0, %v1764
      %v1766 = vpop.f32.mrf.mxu0
      %v1767 = vpop.f32.mrf.mxu0
      %v1768 = vadd.f32 0.0, %v1767
      %v1769 = vpop.f32.mrf.mxu0
      %1770 = vmatprep.mubr.bf16.mxu0 %v1710
      %1771 = vmatmul.mubr.bf16.gmra.mxu0 %v1709
      %v1772 = vpop.f32.mrf.mxu0
      %v1773 = vadd.f32 0.0, %v1772
      %v1774 = vpop.f32.mrf.mxu0
      %v1775 = vpop.f32.mrf.mxu0
      %v1776 = vadd.f32 0.0, %v1775
      %v1777 = vpop.f32.mrf.mxu0
      %1778 = vmatprep.mubr.bf16.mxu0 %v1713
      %1779 = vmatmul.mubr.bf16.gmra.mxu0 %v1712
      %v1780 = vpop.f32.mrf.mxu0
      %v1781 = vadd.f32 0.0, %v1780
      %v1782 = vpop.f32.mrf.mxu0
      %v1783 = vpop.f32.mrf.mxu0
      %v1784 = vadd.f32 0.0, %v1783
      %v1785 = vpop.f32.mrf.mxu0
      %1786 = vmatprep.mubr.bf16.mxu0 %v1716
      %1787 = vmatmul.mubr.bf16.gmra.mxu0 %v1715
      %v1788 = vpop.f32.mrf.mxu0
      %v1789 = vadd.f32 0.0, %v1788
      %v1790 = vpop.f32.mrf.mxu0
      %v1791 = vpop.f32.mrf.mxu0
      %v1792 = vadd.f32 0.0, %v1791
      %v1793 = vpop.f32.mrf.mxu0
      %1794 = vdwg.mxu0
      %1795 = vmatprep.subr.bf16.mxu0 0
      %1796 = vmatpush1.bf16.msra.mxu0 %v1649
      %1797 = vmatprep.subr.bf16.mxu0 0
      %1798 = vmatpush1.bf16.msra.mxu0 %v1648
      %1799 = vmatprep.subr.bf16.mxu0 0
      %1800 = vmatpush1.bf16.msra.mxu0 %v1647
      %1801 = vmatprep.subr.bf16.mxu0 0
      %1802 = vmatpush1.bf16.msra.mxu0 %v1646
      %1803 = vmatprep.subr.bf16.mxu0 0
      %1804 = vmatpush1.bf16.msra.mxu0 %v1645
      %1805 = vmatprep.subr.bf16.mxu0 0
      %1806 = vmatpush1.bf16.msra.mxu0 %v1644
      %1807 = vmatprep.subr.bf16.mxu0 0
      %1808 = vmatpush1.bf16.msra.mxu0 %v1643
      %1809 = vmatprep.subr.bf16.mxu0 0
      %1810 = vmatpush1.bf16.msra.mxu0 %v1642
      %1811 = vmatprep.subr.bf16.mxu0 0
      %1812 = vmatpush2.bf16.msra.mxu0 0
      %1813 = vmatprep.subr.bf16.mxu0 0
      %1814 = vmatpush2.bf16.msra.mxu0 0
      %1815 = vmatprep.subr.bf16.mxu0 0
      %1816 = vmatpush2.bf16.msra.mxu0 0
      %1817 = vmatprep.subr.bf16.mxu0 0
      %1818 = vmatpush2.bf16.msra.mxu0 0
      %1819 = vmatprep.subr.bf16.mxu0 0
      %1820 = vmatpush2.bf16.msra.mxu0 0
      %1821 = vmatprep.subr.bf16.mxu0 0
      %1822 = vmatpush2.bf16.msra.mxu0 0
      %1823 = vmatprep.subr.bf16.mxu0 0
      %1824 = vmatpush2.bf16.msra.mxu0 0
      %1825 = vmatprep.subr.bf16.mxu0 0
      %1826 = vmatpush2.bf16.msra.mxu0 0
      %1827 = vmatprep.mubr.bf16.mxu0 0
      %1828 = vmatmul.mubr.bf16.gmra.mxu0 %v1708
      %v1829 = vpop.f32.mrf.mxu0
      %v1830 = vadd.f32 %v1765, %v1829
      %v1831 = vpop.f32.mrf.mxu0
      %v1832 = vpop.f32.mrf.mxu0
      %v1833 = vadd.f32 %v1768, %v1832
      %v1834 = vpop.f32.mrf.mxu0
      %1835 = vmatprep.mubr.bf16.mxu0 0
      %1836 = vmatmul.mubr.bf16.gmra.mxu0 %v1711
      %v1837 = vpop.f32.mrf.mxu0
      %v1838 = vadd.f32 %v1773, %v1837
      %v1839 = vpop.f32.mrf.mxu0
      %v1840 = vpop.f32.mrf.mxu0
      %v1841 = vadd.f32 %v1776, %v1840
      %v1842 = vpop.f32.mrf.mxu0
      %1843 = vmatprep.mubr.bf16.mxu0 0
      %1844 = vmatmul.mubr.bf16.gmra.mxu0 %v1714
      %v1845 = vpop.f32.mrf.mxu0
      %v1846 = vadd.f32 %v1781, %v1845
      %v1847 = vpop.f32.mrf.mxu0
      %v1848 = vpop.f32.mrf.mxu0
      %v1849 = vadd.f32 %v1784, %v1848
      %v1850 = vpop.f32.mrf.mxu0
      %1851 = vmatprep.mubr.bf16.mxu0 0
      %1852 = vmatmul.mubr.bf16.gmra.mxu0 %v1717
      %v1853 = vpop.f32.mrf.mxu0
      %v1854 = vadd.f32 %v1789, %v1853
      %v1855 = vpop.f32.mrf.mxu0
      %v1856 = vpop.f32.mrf.mxu0
      %v1857 = vadd.f32 %v1792, %v1856
      %v1858 = vpop.f32.mrf.mxu0
      %1859 = vdwg.mxu0
      %v1860 = vld [vmem:[%s5] sm:$0xff]
      %v1861 = vld [vmem:[%s5 + $0x8] sm:$0xff]
      %v1862 = vld [vmem:[%s5 + $0x10] sm:$0xff]
      %v1863 = vld [vmem:[%s5 + $0x18] sm:$0xff]
      %v1864 = vld [vmem:[%s5 + $0x20] sm:$0xff]
      %v1865 = vld [vmem:[%s5 + $0x28] sm:$0xff]
      %v1866 = vld [vmem:[%s5 + $0x30] sm:$0xff]
      %v1867 = vld [vmem:[%s5 + $0x38] sm:$0xff]
      %1869 = vset.pattern.permute.xlu0 0
      %1870 = vperm.xlu0 %1869, %v1860
      %v1871 = vpop.permute.xlu0 %1870
      %1874 = vset.pattern.permute.xlu0 0
      %1875 = vperm.xlu0 %1874, %v1861
      %v1876 = vpop.permute.xlu0 %1875
      %1879 = vset.pattern.permute.xlu0 0
      %1880 = vperm.xlu0 %1879, %v1862
      %v1881 = vpop.permute.xlu0 %1880
      %1884 = vset.pattern.permute.xlu0 0
      %1885 = vperm.xlu0 %1884, %v1863
      %v1886 = vpop.permute.xlu0 %1885
      %1889 = vset.pattern.permute.xlu0 0
      %1890 = vperm.xlu0 %1889, %v1864
      %v1891 = vpop.permute.xlu0 %1890
      %1894 = vset.pattern.permute.xlu0 0
      %1895 = vperm.xlu0 %1894, %v1865
      %v1896 = vpop.permute.xlu0 %1895
      %1899 = vset.pattern.permute.xlu0 0
      %1900 = vperm.xlu0 %1899, %v1866
      %v1901 = vpop.permute.xlu0 %1900
      %1904 = vset.pattern.permute.xlu0 0
      %1905 = vperm.xlu0 %1904, %v1867
      %v1906 = vpop.permute.xlu0 %1905
      %v1908 = vmul.f32 %v1830, %v1871
      %v1909 = vmul.f32 %v1833, %v1876
      %v1910 = vmul.f32 %v1838, %v1881
      %v1911 = vmul.f32 %v1841, %v1886
      %v1912 = vmul.f32 %v1846, %v1891
      %v1913 = vmul.f32 %v1849, %v1896
      %v1914 = vmul.f32 %v1854, %v1901
      %v1915 = vmul.f32 %v1857, %v1906
      %v1916 = vld [vmem:[%s6] sm:$0xff]
      %v1917 = vld [vmem:[%s6 + $0x8] sm:$0xff]
      %v1918 = vld [vmem:[%s6 + $0x10] sm:$0xff]
      %v1919 = vld [vmem:[%s6 + $0x18] sm:$0xff]
      %v1920 = vld [vmem:[%s6 + $0x20] sm:$0xff]
      %v1921 = vld [vmem:[%s6 + $0x28] sm:$0xff]
      %v1922 = vld [vmem:[%s6 + $0x30] sm:$0xff]
      %v1923 = vld [vmem:[%s6 + $0x38] sm:$0xff]
      %1925 = vset.pattern.permute.xlu0 0
      %1926 = vperm.xlu0 %1925, %v1916
      %v1927 = vpop.permute.xlu0 %1926
      %1930 = vset.pattern.permute.xlu0 0
      %1931 = vperm.xlu0 %1930, %v1917
      %v1932 = vpop.permute.xlu0 %1931
      %1935 = vset.pattern.permute.xlu0 0
      %1936 = vperm.xlu0 %1935, %v1918
      %v1937 = vpop.permute.xlu0 %1936
      %1940 = vset.pattern.permute.xlu0 0
      %1941 = vperm.xlu0 %1940, %v1919
      %v1942 = vpop.permute.xlu0 %1941
      %1945 = vset.pattern.permute.xlu0 0
      %1946 = vperm.xlu0 %1945, %v1920
      %v1947 = vpop.permute.xlu0 %1946
      %1950 = vset.pattern.permute.xlu0 0
      %1951 = vperm.xlu0 %1950, %v1921
      %v1952 = vpop.permute.xlu0 %1951
      %1955 = vset.pattern.permute.xlu0 0
      %1956 = vperm.xlu0 %1955, %v1922
      %v1957 = vpop.permute.xlu0 %1956
      %1960 = vset.pattern.permute.xlu0 0
      %1961 = vperm.xlu0 %1960, %v1923
      %v1962 = vpop.permute.xlu0 %1961
      %v1964 = vadd.f32 %v1908, %v1927
      %v1965 = vadd.f32 %v1909, %v1932
      %v1966 = vadd.f32 %v1910, %v1937
      %v1967 = vadd.f32 %v1911, %v1942
      %v1968 = vadd.f32 %v1912, %v1947
      %v1969 = vadd.f32 %v1913, %v1952
      %v1970 = vadd.f32 %v1914, %v1957
      %v1971 = vadd.f32 %v1915, %v1962
      %v1972 = vmax.f32 %v1964, 0.0
      %v1973 = vmax.f32 %v1965, 0.0
      %v1974 = vmax.f32 %v1966, 0.0
      %v1975 = vmax.f32 %v1967, 0.0
      %v1976 = vmax.f32 %v1968, 0.0
      %v1977 = vmax.f32 %v1969, 0.0
      %v1978 = vmax.f32 %v1970, 0.0
      %v1979 = vmax.f32 %v1971, 0.0
      %1988 = vrot.lane.b32.xlu0 %v1972, 126
      %v1989 = vpop.permute.xlu0 %1988
      %1990 = vrot.lane.b32.xlu0 %v1973, 126
      %v1991 = vpop.permute.xlu0 %1990
      %1992 = vrot.lane.b32.xlu0 %v1974, 126
      %v1993 = vpop.permute.xlu0 %1992
      %1994 = vrot.lane.b32.xlu0 %v1975, 126
      %v1995 = vpop.permute.xlu0 %1994
      %1996 = vrot.lane.b32.xlu0 %v1976, 126
      %v1997 = vpop.permute.xlu0 %1996
      %1998 = vrot.lane.b32.xlu0 %v1977, 126
      %v1999 = vpop.permute.xlu0 %1998
      %2000 = vrot.lane.b32.xlu0 %v1978, 126
      %v2001 = vpop.permute.xlu0 %2000
      %2002 = vrot.lane.b32.xlu0 %v1979, 126
      %v2003 = vpop.permute.xlu0 %2002
      %v2012 = vsel %vm1609, %v1989, 0.0
      %v2013 = vsel %vm1609, %v1991, 0.0
      %v2014 = vsel %vm1609, %v1993, 0.0
      %v2015 = vsel %vm1609, %v1995, 0.0
      %v2016 = vsel %vm1609, %v1997, 0.0
      %v2017 = vsel %vm1609, %v1999, 0.0
      %v2018 = vsel %vm1609, %v2001, 0.0
      %v2019 = vsel %vm1609, %v2003, 0.0
      %v2020 = vmax.f32 %v1972, %v2012
      %v2021 = vmax.f32 %v1973, %v2013
      %v2022 = vmax.f32 %v1974, %v2014
      %v2023 = vmax.f32 %v1975, %v2015
      %v2024 = vmax.f32 %v1976, %v2016
      %v2025 = vmax.f32 %v1977, %v2017
      %v2026 = vmax.f32 %v1978, %v2018
      %v2027 = vmax.f32 %v1979, %v2019
      %2036 = vrot.lane.b32.xlu0 %v2020, 4
      %v2037 = vpop.permute.xlu0 %2036
      %2038 = vrot.lane.b32.xlu0 %v2021, 4
      %v2039 = vpop.permute.xlu0 %2038
      %2040 = vrot.lane.b32.xlu0 %v2022, 4
      %v2041 = vpop.permute.xlu0 %2040
      %2042 = vrot.lane.b32.xlu0 %v2023, 4
      %v2043 = vpop.permute.xlu0 %2042
      %2044 = vrot.lane.b32.xlu0 %v2024, 4
      %v2045 = vpop.permute.xlu0 %2044
      %2046 = vrot.lane.b32.xlu0 %v2025, 4
      %v2047 = vpop.permute.xlu0 %2046
      %2048 = vrot.lane.b32.xlu0 %v2026, 4
      %v2049 = vpop.permute.xlu0 %2048
      %2050 = vrot.lane.b32.xlu0 %v2027, 4
      %v2051 = vpop.permute.xlu0 %2050
      %vm2060 = vcmask 31744
      %v2061 = vsel %vm2060, 0.0, %v2037
      %v2062 = vsel %vm2060, 0.0, %v2039
      %v2063 = vsel %vm2060, 0.0, %v2041
      %v2064 = vsel %vm2060, 0.0, %v2043
      %v2065 = vsel %vm2060, 0.0, %v2045
      %v2066 = vsel %vm2060, 0.0, %v2047
      %v2067 = vsel %vm2060, 0.0, %v2049
      %v2068 = vsel %vm2060, 0.0, %v2051
      %2069 = vrot.lane.b32.xlu0 %v2020, 124
      %v2070 = vpop.permute.xlu0 %2069
      %2071 = vrot.lane.b32.xlu0 %v2021, 124
      %v2072 = vpop.permute.xlu0 %2071
      %2073 = vrot.lane.b32.xlu0 %v2022, 124
      %v2074 = vpop.permute.xlu0 %2073
      %2075 = vrot.lane.b32.xlu0 %v2023, 124
      %v2076 = vpop.permute.xlu0 %2075
      %2077 = vrot.lane.b32.xlu0 %v2024, 124
      %v2078 = vpop.permute.xlu0 %2077
      %2079 = vrot.lane.b32.xlu0 %v2025, 124
      %v2080 = vpop.permute.xlu0 %2079
      %2081 = vrot.lane.b32.xlu0 %v2026, 124
      %v2082 = vpop.permute.xlu0 %2081
      %2083 = vrot.lane.b32.xlu0 %v2027, 124
      %v2084 = vpop.permute.xlu0 %2083
      %vm2093 = vcmask 490496
      %v2094 = vsel %vm2093, %v2070, 0.0
      %v2095 = vsel %vm2093, %v2072, 0.0
      %v2096 = vsel %vm2093, %v2074, 0.0
      %v2097 = vsel %vm2093, %v2076, 0.0
      %v2098 = vsel %vm2093, %v2078, 0.0
      %v2099 = vsel %vm2093, %v2080, 0.0
      %v2100 = vsel %vm2093, %v2082, 0.0
      %v2101 = vsel %vm2093, %v2084, 0.0
      %v2102 = vpack.c.bf16 %v2062, %v2061
      %v2103 = vpack.c.bf16 %v2064, %v2063
      %v2104 = vpack.c.bf16 %v2066, %v2065
      %v2105 = vpack.c.bf16 %v2068, %v2067
      %v2106 = vpack.c.bf16 %v2021, %v2020
      %v2107 = vpack.c.bf16 %v2023, %v2022
      %v2108 = vpack.c.bf16 %v2025, %v2024
      %v2109 = vpack.c.bf16 %v2027, %v2026
      %v2110 = vpack.c.bf16 %v2095, %v2094
      %v2111 = vpack.c.bf16 %v2097, %v2096
      %v2112 = vpack.c.bf16 %v2099, %v2098
      %v2113 = vpack.c.bf16 %v2101, %v2100
      %v2114 = vld [vmem:[%s7] sm:$0xff]
      %v2115 = vld [vmem:[%s7 + $0x8] sm:$0xff]
      %v2116 = vld [vmem:[%s7 + $0x10] sm:$0xff]
      %v2117 = vld [vmem:[%s7 + $0x18] sm:$0xff]
      %v2122 = vunpack.c.l.b16 %v2114
      %v2123 = vunpack.c.h.b16 %v2114
      %v2124 = vunpack.c.l.b16 %v2115
      %v2125 = vunpack.c.h.b16 %v2115
      %v2126 = vunpack.c.l.b16 %v2116
      %v2127 = vunpack.c.h.b16 %v2116
      %v2128 = vunpack.c.l.b16 %v2117
      %v2129 = vunpack.c.h.b16 %v2117
      %v2130 = vpack.c.b16 %v2124, %v2122
      %v2131 = vpack.c.b16 %v2125, %v2123
      %v2132 = vpack.c.b16 %v2128, %v2126
      %v2133 = vpack.c.b16 %v2129, %v2127
      %vm2136 = vcmask 523264
      %v2138 = vsel %vm2136, %v2131, 0
      %v2141 = vsel %vm2136, %v2133, 0
      %2143 = vmatprep.subr.bf16.mxu0 0
      %2144 = vmatpush1.bf16.msra.mxu0 %v2109
      %2145 = vmatprep.subr.bf16.mxu0 0
      %2146 = vmatpush1.bf16.msra.mxu0 %v2108
      %2147 = vmatprep.subr.bf16.mxu0 0
      %2148 = vmatpush1.bf16.msra.mxu0 %v2107
      %2149 = vmatprep.subr.bf16.mxu0 0
      %2150 = vmatpush1.bf16.msra.mxu0 %v2106
      %2151 = vmatprep.subr.bf16.mxu0 0
      %2152 = vmatpush1.bf16.msra.mxu0 %v2105
      %2153 = vmatprep.subr.bf16.mxu0 0
      %2154 = vmatpush1.bf16.msra.mxu0 %v2104
      %2155 = vmatprep.subr.bf16.mxu0 0
      %2156 = vmatpush1.bf16.msra.mxu0 %v2103
      %2157 = vmatprep.subr.bf16.mxu0 0
      %2158 = vmatpush1.bf16.msra.mxu0 %v2102
      %2159 = vmatprep.subr.bf16.mxu0 0
      %2160 = vmatpush2.bf16.msra.mxu0 0
      %2161 = vmatprep.subr.bf16.mxu0 0
      %2162 = vmatpush2.bf16.msra.mxu0 0
      %2163 = vmatprep.subr.bf16.mxu0 0
      %2164 = vmatpush2.bf16.msra.mxu0 0
      %2165 = vmatprep.subr.bf16.mxu0 0
      %2166 = vmatpush2.bf16.msra.mxu0 0
      %2167 = vmatprep.subr.bf16.mxu0 0
      %2168 = vmatpush2.bf16.msra.mxu0 %v2113
      %2169 = vmatprep.subr.bf16.mxu0 0
      %2170 = vmatpush2.bf16.msra.mxu0 %v2112
      %2171 = vmatprep.subr.bf16.mxu0 0
      %2172 = vmatpush2.bf16.msra.mxu0 %v2111
      %2173 = vmatprep.subr.bf16.mxu0 0
      %2174 = vmatpush2.bf16.msra.mxu0 %v2110
      %2175 = vmatprep.mubr.bf16.mxu0 %v2138
      %2176 = vmatmul.mubr.bf16.gmra.mxu0 %v2130
      %v2177 = vpop.f32.mrf.mxu0
      %v2178 = vadd.f32 0.0, %v2177
      %v2179 = vpop.f32.mrf.mxu0
      %v2180 = vpop.f32.mrf.mxu0
      %v2181 = vadd.f32 0.0, %v2180
      %v2182 = vpop.f32.mrf.mxu0
      %2183 = vmatprep.mubr.bf16.mxu0 %v2141
      %2184 = vmatmul.mubr.bf16.gmra.mxu0 %v2132
      %v2185 = vpop.f32.mrf.mxu0
      %v2186 = vadd.f32 0.0, %v2185
      %v2187 = vpop.f32.mrf.mxu0
      %v2188 = vpop.f32.mrf.mxu0
      %v2189 = vadd.f32 0.0, %v2188
      %v2190 = vpop.f32.mrf.mxu0
      %2191 = vdwg.mxu0
      %v2192 = vld [vmem:[%s8] sm:$0xff]
      %v2193 = vld [vmem:[%s8 + $0x8] sm:$0xff]
      %v2194 = vld [vmem:[%s8 + $0x10] sm:$0xff]
      %v2195 = vld [vmem:[%s8 + $0x18] sm:$0xff]
      %2197 = vset.pattern.permute.xlu0 0
      %2198 = vperm.xlu0 %2197, %v2192
      %v2199 = vpop.permute.xlu0 %2198
      %2202 = vset.pattern.permute.xlu0 0
      %2203 = vperm.xlu0 %2202, %v2193
      %v2204 = vpop.permute.xlu0 %2203
      %2207 = vset.pattern.permute.xlu0 0
      %2208 = vperm.xlu0 %2207, %v2194
      %v2209 = vpop.permute.xlu0 %2208
      %2212 = vset.pattern.permute.xlu0 0
      %2213 = vperm.xlu0 %2212, %v2195
      %v2214 = vpop.permute.xlu0 %2213
      %v2216 = vmul.f32 %v2178, %v2199
      %v2217 = vmul.f32 %v2181, %v2204
      %v2218 = vmul.f32 %v2186, %v2209
      %v2219 = vmul.f32 %v2189, %v2214
      %v2220 = vld [vmem:[%s9] sm:$0xff]
      %v2221 = vld [vmem:[%s9 + $0x8] sm:$0xff]
      %v2222 = vld [vmem:[%s9 + $0x10] sm:$0xff]
      %v2223 = vld [vmem:[%s9 + $0x18] sm:$0xff]
      %2225 = vset.pattern.permute.xlu0 0
      %2226 = vperm.xlu0 %2225, %v2220
      %v2227 = vpop.permute.xlu0 %2226
      %2230 = vset.pattern.permute.xlu0 0
      %2231 = vperm.xlu0 %2230, %v2221
      %v2232 = vpop.permute.xlu0 %2231
      %2235 = vset.pattern.permute.xlu0 0
      %2236 = vperm.xlu0 %2235, %v2222
      %v2237 = vpop.permute.xlu0 %2236
      %2240 = vset.pattern.permute.xlu0 0
      %2241 = vperm.xlu0 %2240, %v2223
      %v2242 = vpop.permute.xlu0 %2241
      %v2244 = vadd.f32 %v2216, %v2227
      %v2245 = vadd.f32 %v2217, %v2232
      %v2246 = vadd.f32 %v2218, %v2237
      %v2247 = vadd.f32 %v2219, %v2242
      %v2248 = vmax.f32 %v2244, 0.0
      %v2249 = vmax.f32 %v2245, 0.0
      %v2250 = vmax.f32 %v2246, 0.0
      %v2251 = vmax.f32 %v2247, 0.0
      %2256 = vrot.lane.b32.xlu0 %v2248, 124
      %v2257 = vpop.permute.xlu0 %2256
      %2258 = vrot.lane.b32.xlu0 %v2249, 124
      %v2259 = vpop.permute.xlu0 %2258
      %2260 = vrot.lane.b32.xlu0 %v2250, 124
      %v2261 = vpop.permute.xlu0 %2260
      %2262 = vrot.lane.b32.xlu0 %v2251, 124
      %v2263 = vpop.permute.xlu0 %2262
      %v2268 = vsel %vm2093, %v2257, 0.0
      %v2269 = vsel %vm2093, %v2259, 0.0
      %v2270 = vsel %vm2093, %v2261, 0.0
      %v2271 = vsel %vm2093, %v2263, 0.0
      %v2272 = vmax.f32 %v2248, %v2268
      %v2273 = vmax.f32 %v2249, %v2269
      %v2274 = vmax.f32 %v2250, %v2270
      %v2275 = vmax.f32 %v2251, %v2271
      %2280 = vrot.lane.b32.xlu0 %v2272, 8
      %v2281 = vpop.permute.xlu0 %2280
      %2282 = vrot.lane.b32.xlu0 %v2273, 8
      %v2283 = vpop.permute.xlu0 %2282
      %2284 = vrot.lane.b32.xlu0 %v2274, 8
      %v2285 = vpop.permute.xlu0 %2284
      %2286 = vrot.lane.b32.xlu0 %v2275, 8
      %v2287 = vpop.permute.xlu0 %2286
      %vm2292 = vcmask 64512
      %v2293 = vsel %vm2292, 0.0, %v2281
      %v2294 = vsel %vm2292, 0.0, %v2283
      %v2295 = vsel %vm2292, 0.0, %v2285
      %v2296 = vsel %vm2292, 0.0, %v2287
      %2297 = vrot.lane.b32.xlu0 %v2272, 120
      %v2298 = vpop.permute.xlu0 %2297
      %2299 = vrot.lane.b32.xlu0 %v2273, 120
      %v2300 = vpop.permute.xlu0 %2299
      %2301 = vrot.lane.b32.xlu0 %v2274, 120
      %v2302 = vpop.permute.xlu0 %2301
      %2303 = vrot.lane.b32.xlu0 %v2275, 120
      %v2304 = vpop.permute.xlu0 %2303
      %vm2309 = vcmask 457728
      %v2310 = vsel %vm2309, %v2298, 0.0
      %v2311 = vsel %vm2309, %v2300, 0.0
      %v2312 = vsel %vm2309, %v2302, 0.0
      %v2313 = vsel %vm2309, %v2304, 0.0
      %v2314 = vpack.c.bf16 %v2294, %v2293
      %v2315 = vpack.c.bf16 %v2296, %v2295
      %v2316 = vpack.c.bf16 %v2273, %v2272
      %v2317 = vpack.c.bf16 %v2275, %v2274
      %v2318 = vpack.c.bf16 %v2311, %v2310
      %v2319 = vpack.c.bf16 %v2313, %v2312
      %v2320 = vld [vmem:[%s10] sm:$0xf]
      %v2321 = vld [vmem:[%s10 + $0x4] sm:$0xf]
      %v2322 = vld [vmem:[%s10 + $0x8] sm:$0xf]
      %v2323 = vld [vmem:[%s10 + $0xc] sm:$0xf]
      %v2328 = vunpack.c.l.b16 %v2320
      %v2329 = vunpack.c.l.b16 %v2321
      %v2330 = vunpack.c.l.b16 %v2322
      %v2331 = vunpack.c.l.b16 %v2323
      %v2332 = vpack.c.b16 %v2329, %v2328
      %v2333 = vpack.c.b16 %v2331, %v2330
      %vm2334 = vcmask 785408
      %v2336 = vsel %vm2334, %v2332, 0
      %v2339 = vsel %vm2334, %v2333, 0
      %2341 = vmatprep.subr.bf16.mxu0 0
      %2342 = vmatpush1.bf16.msra.mxu0 0
      %2343 = vmatprep.subr.bf16.mxu0 0
      %2344 = vmatpush1.bf16.msra.mxu0 0
      %2345 = vmatprep.subr.bf16.mxu0 0
      %2346 = vmatpush1.bf16.msra.mxu0 %v2319
      %2347 = vmatprep.subr.bf16.mxu0 0
      %2348 = vmatpush1.bf16.msra.mxu0 %v2318
      %2349 = vmatprep.subr.bf16.mxu0 0
      %2350 = vmatpush1.bf16.msra.mxu0 %v2317
      %2351 = vmatprep.subr.bf16.mxu0 0
      %2352 = vmatpush1.bf16.msra.mxu0 %v2316
      %2353 = vmatprep.subr.bf16.mxu0 0
      %2354 = vmatpush1.bf16.msra.mxu0 %v2315
      %2355 = vmatprep.subr.bf16.mxu0 0
      %2356 = vmatpush1.bf16.msra.mxu0 %v2314
      %2357 = vmatprep.subr.bf16.mxu0 0
      %2358 = vmatpush2.bf16.msra.mxu0 0
      %2359 = vmatprep.subr.bf16.mxu0 0
      %2360 = vmatpush2.bf16.msra.mxu0 0
      %2361 = vmatprep.subr.bf16.mxu0 0
      %2362 = vmatpush2.bf16.msra.mxu0 0
      %2363 = vmatprep.subr.bf16.mxu0 0
      %2364 = vmatpush2.bf16.msra.mxu0 0
      %2365 = vmatprep.subr.bf16.mxu0 0
      %2366 = vmatpush2.bf16.msra.mxu0 0
      %2367 = vmatprep.subr.bf16.mxu0 0
      %2368 = vmatpush2.bf16.msra.mxu0 0
      %2369 = vmatprep.subr.bf16.mxu0 0
      %2370 = vmatpush2.bf16.msra.mxu0 0
      %2371 = vmatprep.subr.bf16.mxu0 0
      %2372 = vmatpush2.bf16.msra.mxu0 0
      %2373 = vmatprep.mubr.bf16.mxu0 0
      %2374 = vmatmul.mubr.bf16.gmra.mxu0 %v2336
      %v2375 = vpop.f32.mrf.mxu0
      %v2376 = vadd.f32 0.0, %v2375
      %v2377 = vpop.f32.mrf.mxu0
      %v2378 = vpop.f32.mrf.mxu0
      %v2379 = vadd.f32 0.0, %v2378
      %v2380 = vpop.f32.mrf.mxu0
      %2381 = vmatprep.mubr.bf16.mxu0 0
      %2382 = vmatmul.mubr.bf16.gmra.mxu0 %v2339
      %v2383 = vpop.f32.mrf.mxu0
      %v2384 = vadd.f32 0.0, %v2383
      %v2385 = vpop.f32.mrf.mxu0
      %v2386 = vpop.f32.mrf.mxu0
      %v2387 = vadd.f32 0.0, %v2386
      %v2388 = vpop.f32.mrf.mxu0
      %2389 = vdwg.mxu0
      %v2390 = vld [vmem:[%s11] sm:$0xff]
      %v2391 = vld [vmem:[%s11 + $0x8] sm:$0xff]
      %v2392 = vld [vmem:[%s11 + $0x10] sm:$0xff]
      %v2393 = vld [vmem:[%s11 + $0x18] sm:$0xff]
      %2395 = vset.pattern.permute.xlu0 0
      %2396 = vperm.xlu0 %2395, %v2390
      %v2397 = vpop.permute.xlu0 %2396
      %2400 = vset.pattern.permute.xlu0 0
      %2401 = vperm.xlu0 %2400, %v2391
      %v2402 = vpop.permute.xlu0 %2401
      %2405 = vset.pattern.permute.xlu0 0
      %2406 = vperm.xlu0 %2405, %v2392
      %v2407 = vpop.permute.xlu0 %2406
      %2410 = vset.pattern.permute.xlu0 0
      %2411 = vperm.xlu0 %2410, %v2393
      %v2412 = vpop.permute.xlu0 %2411
      %v2414 = vmul.f32 %v2376, %v2397
      %v2415 = vmul.f32 %v2379, %v2402
      %v2416 = vmul.f32 %v2384, %v2407
      %v2417 = vmul.f32 %v2387, %v2412
      %v2418 = vld [vmem:[%s12] sm:$0xff]
      %v2419 = vld [vmem:[%s12 + $0x8] sm:$0xff]
      %v2420 = vld [vmem:[%s12 + $0x10] sm:$0xff]
      %v2421 = vld [vmem:[%s12 + $0x18] sm:$0xff]
      %2423 = vset.pattern.permute.xlu0 0
      %2424 = vperm.xlu0 %2423, %v2418
      %v2425 = vpop.permute.xlu0 %2424
      %2428 = vset.pattern.permute.xlu0 0
      %2429 = vperm.xlu0 %2428, %v2419
      %v2430 = vpop.permute.xlu0 %2429
      %2433 = vset.pattern.permute.xlu0 0
      %2434 = vperm.xlu0 %2433, %v2420
      %v2435 = vpop.permute.xlu0 %2434
      %2438 = vset.pattern.permute.xlu0 0
      %2439 = vperm.xlu0 %2438, %v2421
      %v2440 = vpop.permute.xlu0 %2439
      %v2442 = vadd.f32 %v2414, %v2425
      %v2443 = vadd.f32 %v2415, %v2430
      %v2444 = vadd.f32 %v2416, %v2435
      %v2445 = vadd.f32 %v2417, %v2440
      %v2446 = vmax.f32 %v2442, 0.0
      %v2447 = vmax.f32 %v2443, 0.0
      %v2448 = vmax.f32 %v2444, 0.0
      %v2449 = vmax.f32 %v2445, 0.0
      %2454 = vrot.lane.b32.xlu0 %v2446, 120
      %v2455 = vpop.permute.xlu0 %2454
      %2456 = vrot.lane.b32.xlu0 %v2447, 120
      %v2457 = vpop.permute.xlu0 %2456
      %2458 = vrot.lane.b32.xlu0 %v2448, 120
      %v2459 = vpop.permute.xlu0 %2458
      %2460 = vrot.lane.b32.xlu0 %v2449, 120
      %v2461 = vpop.permute.xlu0 %2460
      %v2466 = vsel %vm2309, %v2455, 0.0
      %v2467 = vsel %vm2309, %v2457, 0.0
      %v2468 = vsel %vm2309, %v2459, 0.0
      %v2469 = vsel %vm2309, %v2461, 0.0
      %v2470 = vmax.f32 %v2446, %v2466
      %v2471 = vmax.f32 %v2447, %v2467
      %v2472 = vmax.f32 %v2448, %v2468
      %v2473 = vmax.f32 %v2449, %v2469
      %2478 = vrot.lane.b32.xlu0 %v2470, 16
      %v2479 = vpop.permute.xlu0 %2478
      %2480 = vrot.lane.b32.xlu0 %v2471, 16
      %v2481 = vpop.permute.xlu0 %2480
      %2482 = vrot.lane.b32.xlu0 %v2472, 16
      %v2483 = vpop.permute.xlu0 %2482
      %2484 = vrot.lane.b32.xlu0 %v2473, 16
      %v2485 = vpop.permute.xlu0 %2484
      %vm2490 = vcmask 130048
      %v2491 = vsel %vm2490, 0.0, %v2479
      %v2492 = vsel %vm2490, 0.0, %v2481
      %v2493 = vsel %vm2490, 0.0, %v2483
      %v2494 = vsel %vm2490, 0.0, %v2485
      %2495 = vrot.lane.b32.xlu0 %v2470, 112
      %v2496 = vpop.permute.xlu0 %2495
      %2497 = vrot.lane.b32.xlu0 %v2471, 112
      %v2498 = vpop.permute.xlu0 %2497
      %2499 = vrot.lane.b32.xlu0 %v2472, 112
      %v2500 = vpop.permute.xlu0 %2499
      %2501 = vrot.lane.b32.xlu0 %v2473, 112
      %v2502 = vpop.permute.xlu0 %2501
      %vm2507 = vcmask 392192
      %v2508 = vsel %vm2507, %v2496, 0.0
      %v2509 = vsel %vm2507, %v2498, 0.0
      %v2510 = vsel %vm2507, %v2500, 0.0
      %v2511 = vsel %vm2507, %v2502, 0.0
      %v2512 = vpack.c.bf16 %v2492, %v2491
      %v2513 = vpack.c.bf16 %v2494, %v2493
      %v2514 = vpack.c.bf16 %v2471, %v2470
      %v2515 = vpack.c.bf16 %v2473, %v2472
      %v2516 = vpack.c.bf16 %v2509, %v2508
      %v2517 = vpack.c.bf16 %v2511, %v2510
      %v2518 = vld [vmem:[%s13] sm:$0xf]
      %v2519 = vld [vmem:[%s13 + $0x4] sm:$0xf]
      %v2520 = vld [vmem:[%s13 + $0x8] sm:$0xf]
      %v2521 = vld [vmem:[%s13 + $0xc] sm:$0xf]
      %v2526 = vunpack.c.l.b16 %v2518
      %v2527 = vunpack.c.l.b16 %v2519
      %v2528 = vunpack.c.l.b16 %v2520
      %v2529 = vunpack.c.l.b16 %v2521
      %v2530 = vpack.c.b16 %v2527, %v2526
      %v2531 = vpack.c.b16 %v2529, %v2528
      %v2533 = vsel %vm2334, %v2530, 0
      %v2536 = vsel %vm2334, %v2531, 0
      %2538 = vmatprep.subr.bf16.mxu0 0
      %2539 = vmatpush1.bf16.msra.mxu0 0
      %2540 = vmatprep.subr.bf16.mxu0 0
      %2541 = vmatpush1.bf16.msra.mxu0 0
      %2542 = vmatprep.subr.bf16.mxu0 0
      %2543 = vmatpush1.bf16.msra.mxu0 %v2517
      %2544 = vmatprep.subr.bf16.mxu0 0
      %2545 = vmatpush1.bf16.msra.mxu0 %v2516
      %2546 = vmatprep.subr.bf16.mxu0 0
      %2547 = vmatpush1.bf16.msra.mxu0 %v2515
      %2548 = vmatprep.subr.bf16.mxu0 0
      %2549 = vmatpush1.bf16.msra.mxu0 %v2514
      %2550 = vmatprep.subr.bf16.mxu0 0
      %2551 = vmatpush1.bf16.msra.mxu0 %v2513
      %2552 = vmatprep.subr.bf16.mxu0 0
      %2553 = vmatpush1.bf16.msra.mxu0 %v2512
      %2554 = vmatprep.subr.bf16.mxu0 0
      %2555 = vmatpush2.bf16.msra.mxu0 0
      %2556 = vmatprep.subr.bf16.mxu0 0
      %2557 = vmatpush2.bf16.msra.mxu0 0
      %2558 = vmatprep.subr.bf16.mxu0 0
      %2559 = vmatpush2.bf16.msra.mxu0 0
      %2560 = vmatprep.subr.bf16.mxu0 0
      %2561 = vmatpush2.bf16.msra.mxu0 0
      %2562 = vmatprep.subr.bf16.mxu0 0
      %2563 = vmatpush2.bf16.msra.mxu0 0
      %2564 = vmatprep.subr.bf16.mxu0 0
      %2565 = vmatpush2.bf16.msra.mxu0 0
      %2566 = vmatprep.subr.bf16.mxu0 0
      %2567 = vmatpush2.bf16.msra.mxu0 0
      %2568 = vmatprep.subr.bf16.mxu0 0
      %2569 = vmatpush2.bf16.msra.mxu0 0
      %2570 = vmatprep.mubr.bf16.mxu0 0
      %2571 = vmatmul.mubr.bf16.gmra.mxu0 %v2533
      %v2572 = vpop.f32.mrf.mxu0
      %v2573 = vadd.f32 0.0, %v2572
      %v2574 = vpop.f32.mrf.mxu0
      %v2575 = vpop.f32.mrf.mxu0
      %v2576 = vadd.f32 0.0, %v2575
      %v2577 = vpop.f32.mrf.mxu0
      %2578 = vmatprep.mubr.bf16.mxu0 0
      %2579 = vmatmul.mubr.bf16.gmra.mxu0 %v2536
      %v2580 = vpop.f32.mrf.mxu0
      %v2581 = vadd.f32 0.0, %v2580
      %v2582 = vpop.f32.mrf.mxu0
      %v2583 = vpop.f32.mrf.mxu0
      %v2584 = vadd.f32 0.0, %v2583
      %v2585 = vpop.f32.mrf.mxu0
      %2586 = vdwg.mxu0
      %v2587 = vld [vmem:[%s14] sm:$0xff]
      %v2588 = vld [vmem:[%s14 + $0x8] sm:$0xff]
      %v2589 = vld [vmem:[%s14 + $0x10] sm:$0xff]
      %v2590 = vld [vmem:[%s14 + $0x18] sm:$0xff]
      %2592 = vset.pattern.permute.xlu0 0
      %2593 = vperm.xlu0 %2592, %v2587
      %v2594 = vpop.permute.xlu0 %2593
      %2597 = vset.pattern.permute.xlu0 0
      %2598 = vperm.xlu0 %2597, %v2588
      %v2599 = vpop.permute.xlu0 %2598
      %2602 = vset.pattern.permute.xlu0 0
      %2603 = vperm.xlu0 %2602, %v2589
      %v2604 = vpop.permute.xlu0 %2603
      %2607 = vset.pattern.permute.xlu0 0
      %2608 = vperm.xlu0 %2607, %v2590
      %v2609 = vpop.permute.xlu0 %2608
      %v2611 = vmul.f32 %v2573, %v2594
      %v2612 = vmul.f32 %v2576, %v2599
      %v2613 = vmul.f32 %v2581, %v2604
      %v2614 = vmul.f32 %v2584, %v2609
      %v2615 = vld [vmem:[%s15] sm:$0xff]
      %v2616 = vld [vmem:[%s15 + $0x8] sm:$0xff]
      %v2617 = vld [vmem:[%s15 + $0x10] sm:$0xff]
      %v2618 = vld [vmem:[%s15 + $0x18] sm:$0xff]
      %2620 = vset.pattern.permute.xlu0 0
      %2621 = vperm.xlu0 %2620, %v2615
      %v2622 = vpop.permute.xlu0 %2621
      %2625 = vset.pattern.permute.xlu0 0
      %2626 = vperm.xlu0 %2625, %v2616
      %v2627 = vpop.permute.xlu0 %2626
      %2630 = vset.pattern.permute.xlu0 0
      %2631 = vperm.xlu0 %2630, %v2617
      %v2632 = vpop.permute.xlu0 %2631
      %2635 = vset.pattern.permute.xlu0 0
      %2636 = vperm.xlu0 %2635, %v2618
      %v2637 = vpop.permute.xlu0 %2636
      %v2639 = vadd.f32 %v2611, %v2622
      %v2640 = vadd.f32 %v2612, %v2627
      %v2641 = vadd.f32 %v2613, %v2632
      %v2642 = vadd.f32 %v2614, %v2637
      %v2643 = vmax.f32 %v2639, 0.0
      %v2644 = vmax.f32 %v2640, 0.0
      %v2645 = vmax.f32 %v2641, 0.0
      %v2646 = vmax.f32 %v2642, 0.0
      %2651 = vrot.lane.b32.xlu0 %v2643, 112
      %v2652 = vpop.permute.xlu0 %2651
      %2653 = vrot.lane.b32.xlu0 %v2644, 112
      %v2654 = vpop.permute.xlu0 %2653
      %2655 = vrot.lane.b32.xlu0 %v2645, 112
      %v2656 = vpop.permute.xlu0 %2655
      %2657 = vrot.lane.b32.xlu0 %v2646, 112
      %v2658 = vpop.permute.xlu0 %2657
      %v2663 = vsel %vm2507, %v2652, 0.0
      %v2664 = vsel %vm2507, %v2654, 0.0
      %v2665 = vsel %vm2507, %v2656, 0.0
      %v2666 = vsel %vm2507, %v2658, 0.0
      %v2667 = vmax.f32 %v2643, %v2663
      %v2668 = vmax.f32 %v2644, %v2664
      %v2669 = vmax.f32 %v2645, %v2665
      %v2670 = vmax.f32 %v2646, %v2666
      %2675 = vrot.lane.b32.xlu0 %v2667, 32
      %v2676 = vpop.permute.xlu0 %2675
      %2677 = vrot.lane.b32.xlu0 %v2668, 32
      %v2678 = vpop.permute.xlu0 %2677
      %2679 = vrot.lane.b32.xlu0 %v2669, 32
      %v2680 = vpop.permute.xlu0 %2679
      %2681 = vrot.lane.b32.xlu0 %v2670, 32
      %v2682 = vpop.permute.xlu0 %2681
      %vm2687 = vcmask 261120
      %v2688 = vsel %vm2687, 0.0, %v2676
      %v2689 = vsel %vm2687, 0.0, %v2678
      %v2690 = vsel %vm2687, 0.0, %v2680
      %v2691 = vsel %vm2687, 0.0, %v2682
      %2692 = vrot.lane.b32.xlu0 %v2667, 96
      %v2693 = vpop.permute.xlu0 %2692
      %2694 = vrot.lane.b32.xlu0 %v2668, 96
      %v2695 = vpop.permute.xlu0 %2694
      %2696 = vrot.lane.b32.xlu0 %v2669, 96
      %v2697 = vpop.permute.xlu0 %2696
      %2698 = vrot.lane.b32.xlu0 %v2670, 96
      %v2699 = vpop.permute.xlu0 %2698
      %v2704 = vsel %vm2687, %v2693, 0.0
      %v2705 = vsel %vm2687, %v2695, 0.0
      %v2706 = vsel %vm2687, %v2697, 0.0
      %v2707 = vsel %vm2687, %v2699, 0.0
      %v2708 = vpack.c.bf16 %v2689, %v2688
      %v2709 = vpack.c.bf16 %v2691, %v2690
      %v2710 = vpack.c.bf16 %v2668, %v2667
      %v2711 = vpack.c.bf16 %v2670, %v2669
      %v2712 = vpack.c.bf16 %v2705, %v2704
      %v2713 = vpack.c.bf16 %v2707, %v2706
      %v2714 = vld [vmem:[%s16] sm:$0xf]
      %v2715 = vld [vmem:[%s16 + $0x4] sm:$0xf]
      %v2718 = vunpack.c.l.b16 %v2714
      %v2719 = vunpack.c.l.b16 %v2715
      %v2720 = vpack.c.b16 %v2719, %v2718
      %v2722 = vsel %vm2334, %v2720, 0
      %2724 = vmatprep.subr.bf16.mxu0 0
      %2725 = vmatpush1.bf16.msra.mxu0 0
      %2726 = vmatprep.subr.bf16.mxu0 0
      %2727 = vmatpush1.bf16.msra.mxu0 0
      %2728 = vmatprep.subr.bf16.mxu0 0
      %2729 = vmatpush1.bf16.msra.mxu0 %v2713
      %2730 = vmatprep.subr.bf16.mxu0 0
      %2731 = vmatpush1.bf16.msra.mxu0 %v2712
      %2732 = vmatprep.subr.bf16.mxu0 0
      %2733 = vmatpush1.bf16.msra.mxu0 %v2711
      %2734 = vmatprep.subr.bf16.mxu0 0
      %2735 = vmatpush1.bf16.msra.mxu0 %v2710
      %2736 = vmatprep.subr.bf16.mxu0 0
      %2737 = vmatpush1.bf16.msra.mxu0 %v2709
      %2738 = vmatprep.subr.bf16.mxu0 0
      %2739 = vmatpush1.bf16.msra.mxu0 %v2708
      %2740 = vmatprep.subr.bf16.mxu0 0
      %2741 = vmatpush2.bf16.msra.mxu0 0
      %2742 = vmatprep.subr.bf16.mxu0 0
      %2743 = vmatpush2.bf16.msra.mxu0 0
      %2744 = vmatprep.subr.bf16.mxu0 0
      %2745 = vmatpush2.bf16.msra.mxu0 0
      %2746 = vmatprep.subr.bf16.mxu0 0
      %2747 = vmatpush2.bf16.msra.mxu0 0
      %2748 = vmatprep.subr.bf16.mxu0 0
      %2749 = vmatpush2.bf16.msra.mxu0 0
      %2750 = vmatprep.subr.bf16.mxu0 0
      %2751 = vmatpush2.bf16.msra.mxu0 0
      %2752 = vmatprep.subr.bf16.mxu0 0
      %2753 = vmatpush2.bf16.msra.mxu0 0
      %2754 = vmatprep.subr.bf16.mxu0 0
      %2755 = vmatpush2.bf16.msra.mxu0 0
      %2756 = vmatprep.mubr.bf16.mxu0 0
      %2757 = vmatmul.mubr.bf16.gmra.mxu0 %v2722
      %v2758 = vpop.f32.mrf.mxu0
      %v2759 = vadd.f32 0.0, %v2758
      %v2760 = vpop.f32.mrf.mxu0
      %v2761 = vpop.f32.mrf.mxu0
      %v2762 = vadd.f32 0.0, %v2761
      %v2763 = vpop.f32.mrf.mxu0
      %2764 = vdwg.mxu0
      %v2765 = vld [vmem:[%s17] sm:$0xff]
      %v2766 = vld [vmem:[%s17 + $0x8] sm:$0xff]
      %2768 = vset.pattern.permute.xlu0 0
      %2769 = vperm.xlu0 %2768, %v2765
      %v2770 = vpop.permute.xlu0 %2769
      %2773 = vset.pattern.permute.xlu0 0
      %2774 = vperm.xlu0 %2773, %v2766
      %v2775 = vpop.permute.xlu0 %2774
      %v2777 = vmul.f32 %v2759, %v2770
      %v2778 = vmul.f32 %v2762, %v2775
      %v2779 = vld [vmem:[%s18] sm:$0xff]
      %v2780 = vld [vmem:[%s18 + $0x8] sm:$0xff]
      %2782 = vset.pattern.permute.xlu0 0
      %2783 = vperm.xlu0 %2782, %v2779
      %v2784 = vpop.permute.xlu0 %2783
      %2787 = vset.pattern.permute.xlu0 0
      %2788 = vperm.xlu0 %2787, %v2780
      %v2789 = vpop.permute.xlu0 %2788
      %v2791 = vadd.f32 %v2777, %v2784
      %v2792 = vadd.f32 %v2778, %v2789
      %v2793 = vmax.f32 %v2791, 0.0
      %v2794 = vmax.f32 %v2792, 0.0
      %2797 = vrot.lane.b32.xlu0 %v2793, 96
      %v2798 = vpop.permute.xlu0 %2797
      %2799 = vrot.lane.b32.xlu0 %v2794, 96
      %v2800 = vpop.permute.xlu0 %2799
      %v2803 = vsel %vm2687, %v2798, 0.0
      %v2804 = vsel %vm2687, %v2800, 0.0
      %v2805 = vmax.f32 %v2793, %v2803
      %v2806 = vmax.f32 %v2794, %v2804
      %2807 = vst.msk [vmem:[%s602] sm:$0xff] %vm684, %v2805
      %2808 = vst.msk [vmem:[%s602 + $0x8] sm:$0xff] %vm684, %v2806
      %p2809 = scmp.lt.s32.totalorder %s30, 1
      %s2810 = scalar_select %p2809, %s30, 1
      %s2811 = smul.addr %s2810, 2
      %s2812 = smul.addr %s2811, 8
      %s2813 = scalar_lea.vmem %s19, %s2812
      // Predicated region
      $region97: #{encoder_forward.1} parent=95 // pred_check
        %p2814 = pneg %p452
      $region98: #{encoder_forward.1} parent=95 // pred_check_branch
        %2816 = sbr.rel (%p2814) target = $region100
      $region99: #{encoder_forward.1} parent=95 // pred_region
        _
      $region100: #{encoder_forward.1} parent=95 // pred_fallthru
        _
    $region96: #{encoder_forward.1} parent=5 // pred_fallthru
      _
    %p2817 = scmp.le.s32.totalorder 2, %s25
    // Predicated region
    $region101: #{encoder_forward.1} parent=5 // pred_check
      %p2818 = pneg %p2817
    $region102: #{encoder_forward.1} parent=5 // pred_check_branch
      %2820 = sbr.rel (%p2818) target = $region104
    $region103: #{encoder_forward.1} parent=5 // pred_region
      %s2821 = ssub.s32 %s25, 2
      // Predicated region
      $region105: #{encoder_forward.1} parent=103 // pred_check
        %p2822 = pneg %p458
      $region106: #{encoder_forward.1} parent=103 // pred_check_branch
        %2824 = sbr.rel (%p2822) target = $region108
      $region107: #{encoder_forward.1} parent=103 // pred_region
        %p2825 = scmp.lt.s32.totalorder %s31, 1
        %s2826 = scalar_select %p2825, %s31, 1
        %s2827 = smul.addr %s2826, 2
        %s2828 = smul.addr %s2827, 8
        %s2829 = scalar_lea.vmem %s19, %s2828
      $region108: #{encoder_forward.1} parent=103 // pred_fallthru
        _
    $region104: #{encoder_forward.1} parent=5 // pred_fallthru
      _
  $region6: #{encoder_forward.1} parent=0 // loop_footer
    %s29 = sadd.s32 1, %s25
  $region7: #{encoder_forward.1} parent=0 // loop_footer_branch
    %24 = sbr.rel target = $region3
  $region8: #{encoder_forward.1} parent=0 // loop_exit
    _

</llo_original>
